<compile_context>
chip_gen: v7x
topology: tpu7x:2x2x1
jax: 0.10.0
libtpu: 0.0.40
codegen_flags: <defaults>
</compile_context>

<pallas_src>
import functools

import jax
import jax.numpy as jnp
from jax import lax
from jax.experimental import pallas as pl
from jax.experimental.pallas import tpu as pltpu


# ----------------------------------------------------------------------------
# Fused LambdaConv kernel (one batch element per grid step, all in VMEM)
# ----------------------------------------------------------------------------

def _lambda_conv_kernel(x_ref, w_ref, s_ref, b_ref, emb_ref, o_ref, *,
                        heads, kk, uu, vv, mm, H, W):
    n = H * W
    pad = (mm - 1) // 2
    ci = uu * vv                                   # conv2d input channels

    # ---- fused q/k/v 1x1 conv + folded BatchNorm ---------------------------
    x = x_ref[0]                                                   # (C, n)
    proj = jnp.dot(w_ref[...], x, preferred_element_type=jnp.float32)
    proj = proj * s_ref[...] + b_ref[...]                          # (Cqkv, n)

    q_all = proj[0:heads * kk]                                     # (heads*kk, n)
    keys = proj[heads * kk:heads * kk + kk * uu]                   # (kk, n) (uu==1)
    vals = proj[heads * kk + kk * uu:]                             # (vv, n)

    # ---- softmax over the spatial dim (PyTorch Softmax(dim=-1)) ------------
    kmax = jnp.max(keys, axis=-1, keepdims=True)
    e = jnp.exp(keys - kmax)
    sm = e / jnp.sum(e, axis=-1, keepdims=True)                    # (kk, n)

    # lambda_c[k, v] = sum_n softmax[k, n] * values[v, n]
    lam_c = lax.dot_general(sm, vals, (((1,), (1,)), ((), ())),
                            preferred_element_type=jnp.float32)    # (kk, vv)

    # ---- lambda_p = conv2d(values, embedding, padding=pad), done in VMEM ---
    # Tap (i, j) reads source pixel (y + i - pad, x + j - pad).  On the
    # flattened n axis that is a constant shift s = (i-pad)*W + (j-pad) with
    # zero fill at the ends; only the column bound 0 <= x + (j-pad) < W needs
    # an explicit mask (the row bound falls out of the zero fill).
    lane = lax.broadcasted_iota(jnp.int32, (ci, n), 1)
    if W & (W - 1) == 0:
        col = jnp.bitwise_and(lane, W - 1)
    else:
        col = lane % W
    taps = []
    for i in range(mm):
        for j in range(mm):
            dy, dx = i - pad, j - pad
            s = dy * W + dx
            if abs(s) >= n:
                sh = jnp.zeros((ci, n), jnp.float32)
            elif s > 0:
                sh = jnp.concatenate(
                    [vals[:, s:], jnp.zeros((ci, s), jnp.float32)], axis=1)
            elif s < 0:
                sh = jnp.concatenate(
                    [jnp.zeros((ci, -s), jnp.float32), vals[:, :n + s]], axis=1)
            else:
                sh = vals
            if dx != 0:
                valid = jnp.logical_and(col + dx >= 0, col + dx <= W - 1)
                sh = jnp.where(valid, sh, 0.0)
            taps.append(sh)
    stack = jnp.concatenate(taps, axis=0)                          # (mm*mm*ci, n)
    lam_p = jnp.dot(emb_ref[...], stack,
                    preferred_element_type=jnp.float32)            # (kk*vv, n)

    # ---- out[h,v,n] = sum_k q[h,k,n] * (lambda_c[k,v] + lambda_p[k,v,n]) ---
    for h in range(heads):
        q_h = q_all[h * kk:(h + 1) * kk]                           # (kk, n)
        y = lax.dot_general(lam_c, q_h, (((0,), (0,)), ((), ())),
                            preferred_element_type=jnp.float32)    # y_c (vv, n)
        for k in range(kk):
            y = y + q_h[k:k + 1, :] * lam_p[k * vv:(k + 1) * vv]   # + y_p
        o_ref[0, h * vv:(h + 1) * vv, :] = y


def lambda_conv_forward(x, p):
    heads, kk, uu, vv, mm = p['heads'], p['kk'], p['uu'], p['vv'], p['mm']
    stride = p['stride']
    assert uu == 1, "u > 1 not implemented"   # TODO(synk): multi-u (u>1) variant
    B, C, H, W = x.shape
    n = H * W

    # Fold the three projections + BatchNorms into one weight / scale / bias.
    qkv_w = jnp.concatenate([p['q_w'], p['k_w'], p['v_w']], axis=0)       # (Cqkv, C)
    qkv_scale = jnp.concatenate(
        [p['q_scale'], jnp.ones((kk * uu,), jnp.float32), p['v_scale']]).reshape(-1, 1)
    qkv_bias = jnp.concatenate(
        [p['q_bias'], jnp.zeros((kk * uu,), jnp.float32), p['v_bias']]).reshape(-1, 1)
    # embedding (kk*vv, uu*vv, mm, mm) -> (kk*vv, mm*mm*uu*vv), tap-major.
    emb_flat = p['emb'].transpose(0, 2, 3, 1).reshape(kk * vv, mm * mm * uu * vv)

    # Per-batch VMEM working set (f32): x + proj + tap stack + lambda_p + out.
    rows = qkv_w.shape[0]
    vmem_est = 4 * n * (C + rows + (mm * mm + 1) * uu * vv + kk * vv + heads * vv)
    assert vmem_est < 24 * 1024 * 1024, (
        "per-batch slab exceeds the VMEM budget; tile the kernel over n")
    # TODO(synk): tile over n (two-pass / online softmax + lambda_c accumulation)
    # for production image resolutions, especially on v7x (64 MiB VMEM).

    x3 = x.reshape(B, C, n)                                  # free view of NCHW
    out = pl.pallas_call(
        functools.partial(_lambda_conv_kernel, heads=heads, kk=kk, uu=uu,
                          vv=vv, mm=mm, H=H, W=W),
        out_shape=jax.ShapeDtypeStruct((B, heads * vv, n), jnp.float32),
        grid_spec=pltpu.PrefetchScalarGridSpec(
            num_scalar_prefetch=0,
            grid=(B,),
            in_specs=[
                pl.BlockSpec((1, C, n), lambda b: (b, 0, 0)),
                pl.BlockSpec(qkv_w.shape, lambda b: (0, 0)),
                pl.BlockSpec(qkv_scale.shape, lambda b: (0, 0)),
                pl.BlockSpec(qkv_bias.shape, lambda b: (0, 0)),
                pl.BlockSpec(emb_flat.shape, lambda b: (0, 0)),
            ],
            out_specs=pl.BlockSpec((1, heads * vv, n), lambda b: (b, 0, 0)),
        ),
        compiler_params=pltpu.CompilerParams(
            dimension_semantics=("parallel",)),
    )(x3, qkv_w, qkv_scale, qkv_bias, emb_flat)

    out = out.reshape(B, heads * vv, H, W)
    if stride > 1:                                   # nn.AvgPool2d(stride, stride)
        Ho, Wo = H // stride, W // stride
        out = out.reshape(B, heads * vv, Ho, stride, Wo, stride).mean(axis=(3, 5))
    return out


# ----------------------------------------------------------------------------
# Pure-JAX reference (mirrors the PyTorch forward) for correctness checking
# ----------------------------------------------------------------------------

def lambda_conv_reference(x, p):
    heads, kk, uu, vv, mm = p['heads'], p['kk'], p['uu'], p['vv'], p['mm']
    stride = p['stride']
    B, C, H, W = x.shape
    n = H * W
    pad = (mm - 1) // 2

    def conv1x1(w):
        return jnp.einsum('oc,bchw->bohw', w, x)

    q = conv1x1(p['q_w']) * p['q_scale'][None, :, None, None] + p['q_bias'][None, :, None, None]
    keys = conv1x1(p['k_w'])
    vals = conv1x1(p['v_w']) * p['v_scale'][None, :, None, None] + p['v_bias'][None, :, None, None]

    q = q.reshape(B, heads, kk, n)
    sm = jax.nn.softmax(keys.reshape(B, kk, uu, n), axis=-1)
    vals4 = vals.reshape(B, vv, uu, n)
    lam_c = jnp.einsum('bkun,bvun->bkv', sm, vals4)
    y_c = jnp.einsum('bhkn,bkv->bhvn', q, lam_c)
    lam_p = lax.conv_general_dilated(
        vals.reshape(B, uu * vv, H, W), p['emb'], window_strides=(1, 1),
        padding=((pad, pad), (pad, pad)),
        dimension_numbers=('NCHW', 'OIHW', 'NCHW'))
    y_p = jnp.einsum('bhkn,bkvn->bhvn', q, lam_p.reshape(B, kk, vv, n))
    out = (y_c + y_p).reshape(B, heads * vv, H, W)
    if stride > 1:
        Ho, Wo = H // stride, W // stride
        out = out.reshape(B, heads * vv, Ho, stride, Wo, stride).mean(axis=(3, 5))
    return out


# ----------------------------------------------------------------------------
# Deterministic synthetic parameters (inference-mode BatchNorm folded)
# ----------------------------------------------------------------------------

def _folded_bn(key, C, eps=1e-5):
    kg, kb, km, kv = jax.random.split(key, 4)
    gamma = 1.0 + 0.1 * jax.random.normal(kg, (C,), jnp.float32)
    beta = 0.1 * jax.random.normal(kb, (C,), jnp.float32)
    mean = 0.1 * jax.random.normal(km, (C,), jnp.float32)
    var = 1.0 + 0.1 * jax.random.uniform(kv, (C,), jnp.float32)
    scale = gamma * lax.rsqrt(var + eps)
    bias = beta - mean * scale
    return scale, bias


def make_lambda_conv_params(key, in_channels, out_channels, kernel_size=3,
                            stride=1, heads=4, k=8, u=1):
    kk, uu, vv, mm = k, u, out_channels // heads, kernel_size
    ks = jax.random.split(key, 6)
    conv_w = lambda kky, cout: 0.1 * jax.random.normal(
        kky, (cout, in_channels), jnp.float32)
    q_scale, q_bias = _folded_bn(ks[3], kk * heads)
    v_scale, v_bias = _folded_bn(ks[4], vv * uu)
    return dict(
        heads=heads, kk=kk, uu=uu, vv=vv, mm=mm, stride=stride,
        q_w=conv_w(ks[0], kk * heads),
        k_w=conv_w(ks[1], kk * uu),
        v_w=conv_w(ks[2], vv * uu),
        q_scale=q_scale, q_bias=q_bias,
        v_scale=v_scale, v_bias=v_bias,
        emb=jax.random.normal(ks[5], (kk * vv, uu * vv, mm, mm), jnp.float32),
    )


# ----------------------------------------------------------------------------

if __name__ == "__main__":
    key = jax.random.PRNGKey(0)
    kx, kp = jax.random.split(key)
    B, C, H, W = 2, 4, 16, 16
    out_channels, heads, k_dim, u, ksize = 32, 4, 8, 1, 3

    x = jax.random.normal(kx, (B, C, H, W), jnp.float32)
    params = make_lambda_conv_params(kp, C, out_channels, kernel_size=ksize,
                                     stride=1, heads=heads, k=k_dim, u=u)

    out = lambda_conv_forward(x, params)
    jax.block_until_ready(out)
    assert out.shape == (B, out_channels, H, W)

    ref = lambda_conv_reference(x, params)
    err = float(jnp.max(jnp.abs(out - ref)))
    ref_scale = float(jnp.max(jnp.abs(ref)))
    assert err <= 5e-2 * max(ref_scale, 1.0), (
        f"kernel/reference mismatch: max|diff|={err:.4e}, max|ref|={ref_scale:.4e}")
    print("KERNEL_OK")
</pallas_src>

<mosaic_0001>
module attributes {stable_mosaic.version = 11 : i64} {
  func.func @_lambda_conv_kernel(%arg0: i32, %arg1: memref<1x4x256xf32, #tpu.memory_space<vmem>>, %arg2: memref<48x4xf32, #tpu.memory_space<vmem>>, %arg3: memref<48x1xf32, #tpu.memory_space<vmem>>, %arg4: memref<48x1xf32, #tpu.memory_space<vmem>>, %arg5: memref<64x72xf32, #tpu.memory_space<vmem>>, %arg6: memref<1x32x256xf32, #tpu.memory_space<vmem>>) attributes {dimension_semantics = [#tpu.dimension_semantics<parallel>], iteration_bounds = array<i64: 2>, scalar_prefetch = 0 : i64, scratch_operands = 0 : i64, tpu.core_type = #tpu.core_type<tc>, window_params = [{transform_indices = @transform_0, window_bounds = array<i64: 1, 4, 256>}, {pipeline_mode = #tpu.pipeline_mode<synchronous>, transform_indices = @transform_1, window_bounds = array<i64: 48, 4>}, {pipeline_mode = #tpu.pipeline_mode<synchronous>, transform_indices = @transform_2, window_bounds = array<i64: 48, 1>}, {pipeline_mode = #tpu.pipeline_mode<synchronous>, transform_indices = @transform_3, window_bounds = array<i64: 48, 1>}, {pipeline_mode = #tpu.pipeline_mode<synchronous>, transform_indices = @transform_4, window_bounds = array<i64: 64, 72>}, {transform_indices = @transform_5, window_bounds = array<i64: 1, 32, 256>}]} {
    %c0 = arith.constant 0 : index
    %c0_0 = arith.constant 0 : index
    %c0_1 = arith.constant 0 : index
    %0 = vector.load %arg1[%c0, %c0_0, %c0_1] : memref<1x4x256xf32, #tpu.memory_space<vmem>>, vector<1x4x256xf32>
    %1 = vector.shape_cast %0 : vector<1x4x256xf32> to vector<4x256xf32>
    %c0_2 = arith.constant 0 : index
    %c0_3 = arith.constant 0 : index
    %2 = vector.load %arg2[%c0_2, %c0_3] : memref<48x4xf32, #tpu.memory_space<vmem>>, vector<48x4xf32>
    %cst = arith.constant dense<0.000000e+00> : vector<48x256xf32>
    %3 = tpu.matmul %2, %1, %cst {dimension_numbers = #tpu.dot_dimension_numbers<[1], [0], [0], [1], [0, 0, 1, 1], [], []>} : vector<48x4xf32>, vector<4x256xf32>, vector<48x256xf32> -> vector<48x256xf32>
    %c0_4 = arith.constant 0 : index
    %c0_5 = arith.constant 0 : index
    %4 = vector.load %arg3[%c0_4, %c0_5] : memref<48x1xf32, #tpu.memory_space<vmem>>, vector<48x1xf32>
    %5 = vector.broadcast %4 : vector<48x1xf32> to vector<48x256xf32>
    %6 = arith.mulf %3, %5 : vector<48x256xf32>
    %c0_6 = arith.constant 0 : index
    %c0_7 = arith.constant 0 : index
    %7 = vector.load %arg4[%c0_6, %c0_7] : memref<48x1xf32, #tpu.memory_space<vmem>>, vector<48x1xf32>
    %8 = vector.broadcast %7 : vector<48x1xf32> to vector<48x256xf32>
    %9 = arith.addf %6, %8 : vector<48x256xf32>
    %10 = vector.extract_strided_slice %9 {offsets = [0, 0], sizes = [32, 256], strides = [1, 1]} : vector<48x256xf32> to vector<32x256xf32>
    %11 = vector.extract_strided_slice %9 {offsets = [32, 0], sizes = [8, 256], strides = [1, 1]} : vector<48x256xf32> to vector<8x256xf32>
    %12 = vector.extract_strided_slice %9 {offsets = [40, 0], sizes = [8, 256], strides = [1, 1]} : vector<48x256xf32> to vector<8x256xf32>
    %cst_8 = arith.constant dense<0xFF800000> : vector<8xf32>
    %13 = vector.multi_reduction <maximumf>, %11, %cst_8 [1] : vector<8x256xf32> to vector<8xf32>
    %14 = vector.shape_cast %13 : vector<8xf32> to vector<8x1xf32>
    %15 = vector.broadcast %14 : vector<8x1xf32> to vector<8x256xf32>
    %16 = arith.subf %11, %15 : vector<8x256xf32>
    %17 = math.exp %16 : vector<8x256xf32>
    %cst_9 = arith.constant dense<0.000000e+00> : vector<8xf32>
    %18 = vector.multi_reduction <add>, %17, %cst_9 [1] : vector<8x256xf32> to vector<8xf32>
    %19 = vector.shape_cast %18 : vector<8xf32> to vector<8x1xf32>
    %20 = vector.broadcast %19 : vector<8x1xf32> to vector<8x256xf32>
    %21 = arith.divf %17, %20 : vector<8x256xf32>
    %cst_10 = arith.constant dense<0.000000e+00> : vector<8x8xf32>
    %22 = tpu.matmul %21, %12, %cst_10 {dimension_numbers = #tpu.dot_dimension_numbers<[1], [1], [0], [0], [0, 0, 1, 0], [], []>} : vector<8x256xf32>, vector<8x256xf32>, vector<8x8xf32> -> vector<8x8xf32>
    %23 = tpu.iota {dimensions = array<i32: 1>} : vector<8x256xi32>
    %c15_i32 = arith.constant 15 : i32
    %24 = vector.broadcast %c15_i32 : i32 to vector<8x256xi32>
    %25 = arith.andi %23, %24 : vector<8x256xi32>
    %cst_11 = arith.constant 0.000000e+00 : f32
    %26 = vector.broadcast %cst_11 : f32 to vector<8x17xf32>
    %27 = vector.extract_strided_slice %12 {offsets = [0, 0], sizes = [8, 239], strides = [1, 1]} : vector<8x256xf32> to vector<8x239xf32>
    %28 = tpu.concatenate %26, %27 in 1 : vector<8x17xf32>, vector<8x239xf32> -> vector<8x256xf32>
    %c-1_i32 = arith.constant -1 : i32
    %29 = vector.broadcast %c-1_i32 : i32 to vector<8x256xi32>
    %30 = arith.addi %25, %29 : vector<8x256xi32>
    %c0_i32 = arith.constant 0 : i32
    %31 = vector.broadcast %c0_i32 : i32 to vector<8x256xi32>
    %32 = arith.cmpi sge, %30, %31 : vector<8x256xi32>
    %c-1_i32_12 = arith.constant -1 : i32
    %33 = vector.broadcast %c-1_i32_12 : i32 to vector<8x256xi32>
    %34 = arith.addi %25, %33 : vector<8x256xi32>
    %c15_i32_13 = arith.constant 15 : i32
    %35 = vector.broadcast %c15_i32_13 : i32 to vector<8x256xi32>
    %36 = arith.cmpi sle, %34, %35 : vector<8x256xi32>
    %37 = arith.andi %32, %36 : vector<8x256xi1>
    %cst_14 = arith.constant 0.000000e+00 : f32
    %38 = vector.broadcast %cst_14 : f32 to vector<8x256xf32>
    %39 = arith.select %37, %28, %38 : vector<8x256xi1>, vector<8x256xf32>
    %cst_15 = arith.constant 0.000000e+00 : f32
    %40 = vector.broadcast %cst_15 : f32 to vector<8x16xf32>
    %41 = vector.extract_strided_slice %12 {offsets = [0, 0], sizes = [8, 240], strides = [1, 1]} : vector<8x256xf32> to vector<8x240xf32>
    %42 = tpu.concatenate %40, %41 in 1 : vector<8x16xf32>, vector<8x240xf32> -> vector<8x256xf32>
    %cst_16 = arith.constant 0.000000e+00 : f32
    %43 = vector.broadcast %cst_16 : f32 to vector<8x15xf32>
    %44 = vector.extract_strided_slice %12 {offsets = [0, 0], sizes = [8, 241], strides = [1, 1]} : vector<8x256xf32> to vector<8x241xf32>
    %45 = tpu.concatenate %43, %44 in 1 : vector<8x15xf32>, vector<8x241xf32> -> vector<8x256xf32>
    %c1_i32 = arith.constant 1 : i32
    %46 = vector.broadcast %c1_i32 : i32 to vector<8x256xi32>
    %47 = arith.addi %25, %46 : vector<8x256xi32>
    %c0_i32_17 = arith.constant 0 : i32
    %48 = vector.broadcast %c0_i32_17 : i32 to vector<8x256xi32>
    %49 = arith.cmpi sge, %47, %48 : vector<8x256xi32>
    %c1_i32_18 = arith.constant 1 : i32
    %50 = vector.broadcast %c1_i32_18 : i32 to vector<8x256xi32>
    %51 = arith.addi %25, %50 : vector<8x256xi32>
    %c15_i32_19 = arith.constant 15 : i32
    %52 = vector.broadcast %c15_i32_19 : i32 to vector<8x256xi32>
    %53 = arith.cmpi sle, %51, %52 : vector<8x256xi32>
    %54 = arith.andi %49, %53 : vector<8x256xi1>
    %cst_20 = arith.constant 0.000000e+00 : f32
    %55 = vector.broadcast %cst_20 : f32 to vector<8x256xf32>
    %56 = arith.select %54, %45, %55 : vector<8x256xi1>, vector<8x256xf32>
    %cst_21 = arith.constant 0.000000e+00 : f32
    %57 = vector.broadcast %cst_21 : f32 to vector<8x1xf32>
    %58 = vector.extract_strided_slice %12 {offsets = [0, 0], sizes = [8, 255], strides = [1, 1]} : vector<8x256xf32> to vector<8x255xf32>
    %59 = tpu.concatenate %57, %58 in 1 : vector<8x1xf32>, vector<8x255xf32> -> vector<8x256xf32>
    %c-1_i32_22 = arith.constant -1 : i32
    %60 = vector.broadcast %c-1_i32_22 : i32 to vector<8x256xi32>
    %61 = arith.addi %25, %60 : vector<8x256xi32>
    %c0_i32_23 = arith.constant 0 : i32
    %62 = vector.broadcast %c0_i32_23 : i32 to vector<8x256xi32>
    %63 = arith.cmpi sge, %61, %62 : vector<8x256xi32>
    %c-1_i32_24 = arith.constant -1 : i32
    %64 = vector.broadcast %c-1_i32_24 : i32 to vector<8x256xi32>
    %65 = arith.addi %25, %64 : vector<8x256xi32>
    %c15_i32_25 = arith.constant 15 : i32
    %66 = vector.broadcast %c15_i32_25 : i32 to vector<8x256xi32>
    %67 = arith.cmpi sle, %65, %66 : vector<8x256xi32>
    %68 = arith.andi %63, %67 : vector<8x256xi1>
    %cst_26 = arith.constant 0.000000e+00 : f32
    %69 = vector.broadcast %cst_26 : f32 to vector<8x256xf32>
    %70 = arith.select %68, %59, %69 : vector<8x256xi1>, vector<8x256xf32>
    %71 = vector.extract_strided_slice %12 {offsets = [0, 1], sizes = [8, 255], strides = [1, 1]} : vector<8x256xf32> to vector<8x255xf32>
    %cst_27 = arith.constant 0.000000e+00 : f32
    %72 = vector.broadcast %cst_27 : f32 to vector<8x1xf32>
    %73 = tpu.concatenate %71, %72 in 1 : vector<8x255xf32>, vector<8x1xf32> -> vector<8x256xf32>
    %c1_i32_28 = arith.constant 1 : i32
    %74 = vector.broadcast %c1_i32_28 : i32 to vector<8x256xi32>
    %75 = arith.addi %25, %74 : vector<8x256xi32>
    %c0_i32_29 = arith.constant 0 : i32
    %76 = vector.broadcast %c0_i32_29 : i32 to vector<8x256xi32>
    %77 = arith.cmpi sge, %75, %76 : vector<8x256xi32>
    %c1_i32_30 = arith.constant 1 : i32
    %78 = vector.broadcast %c1_i32_30 : i32 to vector<8x256xi32>
    %79 = arith.addi %25, %78 : vector<8x256xi32>
    %c15_i32_31 = arith.constant 15 : i32
    %80 = vector.broadcast %c15_i32_31 : i32 to vector<8x256xi32>
    %81 = arith.cmpi sle, %79, %80 : vector<8x256xi32>
    %82 = arith.andi %77, %81 : vector<8x256xi1>
    %cst_32 = arith.constant 0.000000e+00 : f32
    %83 = vector.broadcast %cst_32 : f32 to vector<8x256xf32>
    %84 = arith.select %82, %73, %83 : vector<8x256xi1>, vector<8x256xf32>
    %85 = vector.extract_strided_slice %12 {offsets = [0, 15], sizes = [8, 241], strides = [1, 1]} : vector<8x256xf32> to vector<8x241xf32>
    %cst_33 = arith.constant 0.000000e+00 : f32
    %86 = vector.broadcast %cst_33 : f32 to vector<8x15xf32>
    %87 = tpu.concatenate %85, %86 in 1 : vector<8x241xf32>, vector<8x15xf32> -> vector<8x256xf32>
    %c-1_i32_34 = arith.constant -1 : i32
    %88 = vector.broadcast %c-1_i32_34 : i32 to vector<8x256xi32>
    %89 = arith.addi %25, %88 : vector<8x256xi32>
    %c0_i32_35 = arith.constant 0 : i32
    %90 = vector.broadcast %c0_i32_35 : i32 to vector<8x256xi32>
    %91 = arith.cmpi sge, %89, %90 : vector<8x256xi32>
    %c-1_i32_36 = arith.constant -1 : i32
    %92 = vector.broadcast %c-1_i32_36 : i32 to vector<8x256xi32>
    %93 = arith.addi %25, %92 : vector<8x256xi32>
    %c15_i32_37 = arith.constant 15 : i32
    %94 = vector.broadcast %c15_i32_37 : i32 to vector<8x256xi32>
    %95 = arith.cmpi sle, %93, %94 : vector<8x256xi32>
    %96 = arith.andi %91, %95 : vector<8x256xi1>
    %cst_38 = arith.constant 0.000000e+00 : f32
    %97 = vector.broadcast %cst_38 : f32 to vector<8x256xf32>
    %98 = arith.select %96, %87, %97 : vector<8x256xi1>, vector<8x256xf32>
    %99 = vector.extract_strided_slice %12 {offsets = [0, 16], sizes = [8, 240], strides = [1, 1]} : vector<8x256xf32> to vector<8x240xf32>
    %cst_39 = arith.constant 0.000000e+00 : f32
    %100 = vector.broadcast %cst_39 : f32 to vector<8x16xf32>
    %101 = tpu.concatenate %99, %100 in 1 : vector<8x240xf32>, vector<8x16xf32> -> vector<8x256xf32>
    %102 = vector.extract_strided_slice %12 {offsets = [0, 17], sizes = [8, 239], strides = [1, 1]} : vector<8x256xf32> to vector<8x239xf32>
    %cst_40 = arith.constant 0.000000e+00 : f32
    %103 = vector.broadcast %cst_40 : f32 to vector<8x17xf32>
    %104 = tpu.concatenate %102, %103 in 1 : vector<8x239xf32>, vector<8x17xf32> -> vector<8x256xf32>
    %c1_i32_41 = arith.constant 1 : i32
    %105 = vector.broadcast %c1_i32_41 : i32 to vector<8x256xi32>
    %106 = arith.addi %25, %105 : vector<8x256xi32>
    %c0_i32_42 = arith.constant 0 : i32
    %107 = vector.broadcast %c0_i32_42 : i32 to vector<8x256xi32>
    %108 = arith.cmpi sge, %106, %107 : vector<8x256xi32>
    %c1_i32_43 = arith.constant 1 : i32
    %109 = vector.broadcast %c1_i32_43 : i32 to vector<8x256xi32>
    %110 = arith.addi %25, %109 : vector<8x256xi32>
    %c15_i32_44 = arith.constant 15 : i32
    %111 = vector.broadcast %c15_i32_44 : i32 to vector<8x256xi32>
    %112 = arith.cmpi sle, %110, %111 : vector<8x256xi32>
    %113 = arith.andi %108, %112 : vector<8x256xi1>
    %cst_45 = arith.constant 0.000000e+00 : f32
    %114 = vector.broadcast %cst_45 : f32 to vector<8x256xf32>
    %115 = arith.select %113, %104, %114 : vector<8x256xi1>, vector<8x256xf32>
    %116 = tpu.concatenate %39, %42, %56, %70, %12, %84, %98, %101, %115 in 0 : vector<8x256xf32>, vector<8x256xf32>, vector<8x256xf32>, vector<8x256xf32>, vector<8x256xf32>, vector<8x256xf32>, vector<8x256xf32>, vector<8x256xf32>, vector<8x256xf32> -> vector<72x256xf32>
    %c0_46 = arith.constant 0 : index
    %c0_47 = arith.constant 0 : index
    %117 = vector.load %arg5[%c0_46, %c0_47] : memref<64x72xf32, #tpu.memory_space<vmem>>, vector<64x72xf32>
    %cst_48 = arith.constant dense<0.000000e+00> : vector<64x256xf32>
    %118 = tpu.matmul %117, %116, %cst_48 {dimension_numbers = #tpu.dot_dimension_numbers<[1], [0], [0], [1], [0, 0, 1, 1], [], []>} : vector<64x72xf32>, vector<72x256xf32>, vector<64x256xf32> -> vector<64x256xf32>
    %119 = vector.extract_strided_slice %10 {offsets = [0, 0], sizes = [8, 256], strides = [1, 1]} : vector<32x256xf32> to vector<8x256xf32>
    %cst_49 = arith.constant dense<0.000000e+00> : vector<8x256xf32>
    %120 = tpu.matmul %22, %119, %cst_49 {dimension_numbers = #tpu.dot_dimension_numbers<[0], [0], [1], [1], [0, 1, 1, 1], [], []>} : vector<8x8xf32>, vector<8x256xf32>, vector<8x256xf32> -> vector<8x256xf32>
    %121 = vector.extract_strided_slice %119 {offsets = [0, 0], sizes = [1, 256], strides = [1, 1]} : vector<8x256xf32> to vector<1x256xf32>
    %122 = vector.extract_strided_slice %118 {offsets = [0, 0], sizes = [8, 256], strides = [1, 1]} : vector<64x256xf32> to vector<8x256xf32>
    %123 = vector.broadcast %121 : vector<1x256xf32> to vector<8x256xf32>
    %124 = arith.mulf %123, %122 : vector<8x256xf32>
    %125 = arith.addf %120, %124 : vector<8x256xf32>
    %126 = vector.extract_strided_slice %119 {offsets = [1, 0], sizes = [1, 256], strides = [1, 1]} : vector<8x256xf32> to vector<1x256xf32>
    %127 = vector.extract_strided_slice %118 {offsets = [8, 0], sizes = [8, 256], strides = [1, 1]} : vector<64x256xf32> to vector<8x256xf32>
    %128 = vector.broadcast %126 : vector<1x256xf32> to vector<8x256xf32>
    %129 = arith.mulf %128, %127 : vector<8x256xf32>
    %130 = arith.addf %125, %129 : vector<8x256xf32>
    %131 = vector.extract_strided_slice %119 {offsets = [2, 0], sizes = [1, 256], strides = [1, 1]} : vector<8x256xf32> to vector<1x256xf32>
    %132 = vector.extract_strided_slice %118 {offsets = [16, 0], sizes = [8, 256], strides = [1, 1]} : vector<64x256xf32> to vector<8x256xf32>
    %133 = vector.broadcast %131 : vector<1x256xf32> to vector<8x256xf32>
    %134 = arith.mulf %133, %132 : vector<8x256xf32>
    %135 = arith.addf %130, %134 : vector<8x256xf32>
    %136 = vector.extract_strided_slice %119 {offsets = [3, 0], sizes = [1, 256], strides = [1, 1]} : vector<8x256xf32> to vector<1x256xf32>
    %137 = vector.extract_strided_slice %118 {offsets = [24, 0], sizes = [8, 256], strides = [1, 1]} : vector<64x256xf32> to vector<8x256xf32>
    %138 = vector.broadcast %136 : vector<1x256xf32> to vector<8x256xf32>
    %139 = arith.mulf %138, %137 : vector<8x256xf32>
    %140 = arith.addf %135, %139 : vector<8x256xf32>
    %141 = vector.extract_strided_slice %119 {offsets = [4, 0], sizes = [1, 256], strides = [1, 1]} : vector<8x256xf32> to vector<1x256xf32>
    %142 = vector.extract_strided_slice %118 {offsets = [32, 0], sizes = [8, 256], strides = [1, 1]} : vector<64x256xf32> to vector<8x256xf32>
    %143 = vector.broadcast %141 : vector<1x256xf32> to vector<8x256xf32>
    %144 = arith.mulf %143, %142 : vector<8x256xf32>
    %145 = arith.addf %140, %144 : vector<8x256xf32>
    %146 = vector.extract_strided_slice %119 {offsets = [5, 0], sizes = [1, 256], strides = [1, 1]} : vector<8x256xf32> to vector<1x256xf32>
    %147 = vector.extract_strided_slice %118 {offsets = [40, 0], sizes = [8, 256], strides = [1, 1]} : vector<64x256xf32> to vector<8x256xf32>
    %148 = vector.broadcast %146 : vector<1x256xf32> to vector<8x256xf32>
    %149 = arith.mulf %148, %147 : vector<8x256xf32>
    %150 = arith.addf %145, %149 : vector<8x256xf32>
    %151 = vector.extract_strided_slice %119 {offsets = [6, 0], sizes = [1, 256], strides = [1, 1]} : vector<8x256xf32> to vector<1x256xf32>
    %152 = vector.extract_strided_slice %118 {offsets = [48, 0], sizes = [8, 256], strides = [1, 1]} : vector<64x256xf32> to vector<8x256xf32>
    %153 = vector.broadcast %151 : vector<1x256xf32> to vector<8x256xf32>
    %154 = arith.mulf %153, %152 : vector<8x256xf32>
    %155 = arith.addf %150, %154 : vector<8x256xf32>
    %156 = vector.extract_strided_slice %119 {offsets = [7, 0], sizes = [1, 256], strides = [1, 1]} : vector<8x256xf32> to vector<1x256xf32>
    %157 = vector.extract_strided_slice %118 {offsets = [56, 0], sizes = [8, 256], strides = [1, 1]} : vector<64x256xf32> to vector<8x256xf32>
    %158 = vector.broadcast %156 : vector<1x256xf32> to vector<8x256xf32>
    %159 = arith.mulf %158, %157 : vector<8x256xf32>
    %160 = arith.addf %155, %159 : vector<8x256xf32>
    %c0_50 = arith.constant 0 : index
    %c0_51 = arith.constant 0 : index
    %c0_52 = arith.constant 0 : index
    %161 = vector.load %arg6[%c0_50, %c0_51, %c0_52] : memref<1x32x256xf32, #tpu.memory_space<vmem>>, vector<1x8x256xf32>
    %162 = vector.shape_cast %161 : vector<1x8x256xf32> to vector<8x256xf32>
    %163 = vector.shape_cast %160 : vector<8x256xf32> to vector<1x8x256xf32>
    tpu.vector_store %arg6[%c0_50, %c0_51, %c0_52], %163 {strides = array<i32>} : memref<1x32x256xf32, #tpu.memory_space<vmem>>, vector<1x8x256xf32>,
    %164 = vector.extract_strided_slice %10 {offsets = [8, 0], sizes = [8, 256], strides = [1, 1]} : vector<32x256xf32> to vector<8x256xf32>
    %cst_53 = arith.constant dense<0.000000e+00> : vector<8x256xf32>
    %165 = tpu.matmul %22, %164, %cst_53 {dimension_numbers = #tpu.dot_dimension_numbers<[0], [0], [1], [1], [0, 1, 1, 1], [], []>} : vector<8x8xf32>, vector<8x256xf32>, vector<8x256xf32> -> vector<8x256xf32>
    %166 = vector.extract_strided_slice %164 {offsets = [0, 0], sizes = [1, 256], strides = [1, 1]} : vector<8x256xf32> to vector<1x256xf32>
    %167 = vector.extract_strided_slice %118 {offsets = [0, 0], sizes = [8, 256], strides = [1, 1]} : vector<64x256xf32> to vector<8x256xf32>
    %168 = vector.broadcast %166 : vector<1x256xf32> to vector<8x256xf32>
    %169 = arith.mulf %168, %167 : vector<8x256xf32>
    %170 = arith.addf %165, %169 : vector<8x256xf32>
    %171 = vector.extract_strided_slice %164 {offsets = [1, 0], sizes = [1, 256], strides = [1, 1]} : vector<8x256xf32> to vector<1x256xf32>
    %172 = vector.extract_strided_slice %118 {offsets = [8, 0], sizes = [8, 256], strides = [1, 1]} : vector<64x256xf32> to vector<8x256xf32>
    %173 = vector.broadcast %171 : vector<1x256xf32> to vector<8x256xf32>
    %174 = arith.mulf %173, %172 : vector<8x256xf32>
    %175 = arith.addf %170, %174 : vector<8x256xf32>
    %176 = vector.extract_strided_slice %164 {offsets = [2, 0], sizes = [1, 256], strides = [1, 1]} : vector<8x256xf32> to vector<1x256xf32>
    %177 = vector.extract_strided_slice %118 {offsets = [16, 0], sizes = [8, 256], strides = [1, 1]} : vector<64x256xf32> to vector<8x256xf32>
    %178 = vector.broadcast %176 : vector<1x256xf32> to vector<8x256xf32>
    %179 = arith.mulf %178, %177 : vector<8x256xf32>
    %180 = arith.addf %175, %179 : vector<8x256xf32>
    %181 = vector.extract_strided_slice %164 {offsets = [3, 0], sizes = [1, 256], strides = [1, 1]} : vector<8x256xf32> to vector<1x256xf32>
    %182 = vector.extract_strided_slice %118 {offsets = [24, 0], sizes = [8, 256], strides = [1, 1]} : vector<64x256xf32> to vector<8x256xf32>
    %183 = vector.broadcast %181 : vector<1x256xf32> to vector<8x256xf32>
    %184 = arith.mulf %183, %182 : vector<8x256xf32>
    %185 = arith.addf %180, %184 : vector<8x256xf32>
    %186 = vector.extract_strided_slice %164 {offsets = [4, 0], sizes = [1, 256], strides = [1, 1]} : vector<8x256xf32> to vector<1x256xf32>
    %187 = vector.extract_strided_slice %118 {offsets = [32, 0], sizes = [8, 256], strides = [1, 1]} : vector<64x256xf32> to vector<8x256xf32>
    %188 = vector.broadcast %186 : vector<1x256xf32> to vector<8x256xf32>
    %189 = arith.mulf %188, %187 : vector<8x256xf32>
    %190 = arith.addf %185, %189 : vector<8x256xf32>
    %191 = vector.extract_strided_slice %164 {offsets = [5, 0], sizes = [1, 256], strides = [1, 1]} : vector<8x256xf32> to vector<1x256xf32>
    %192 = vector.extract_strided_slice %118 {offsets = [40, 0], sizes = [8, 256], strides = [1, 1]} : vector<64x256xf32> to vector<8x256xf32>
    %193 = vector.broadcast %191 : vector<1x256xf32> to vector<8x256xf32>
    %194 = arith.mulf %193, %192 : vector<8x256xf32>
    %195 = arith.addf %190, %194 : vector<8x256xf32>
    %196 = vector.extract_strided_slice %164 {offsets = [6, 0], sizes = [1, 256], strides = [1, 1]} : vector<8x256xf32> to vector<1x256xf32>
    %197 = vector.extract_strided_slice %118 {offsets = [48, 0], sizes = [8, 256], strides = [1, 1]} : vector<64x256xf32> to vector<8x256xf32>
    %198 = vector.broadcast %196 : vector<1x256xf32> to vector<8x256xf32>
    %199 = arith.mulf %198, %197 : vector<8x256xf32>
    %200 = arith.addf %195, %199 : vector<8x256xf32>
    %201 = vector.extract_strided_slice %164 {offsets = [7, 0], sizes = [1, 256], strides = [1, 1]} : vector<8x256xf32> to vector<1x256xf32>
    %202 = vector.extract_strided_slice %118 {offsets = [56, 0], sizes = [8, 256], strides = [1, 1]} : vector<64x256xf32> to vector<8x256xf32>
    %203 = vector.broadcast %201 : vector<1x256xf32> to vector<8x256xf32>
    %204 = arith.mulf %203, %202 : vector<8x256xf32>
    %205 = arith.addf %200, %204 : vector<8x256xf32>
    %c0_54 = arith.constant 0 : index
    %c8 = arith.constant 8 : index
    %c0_55 = arith.constant 0 : index
    %206 = vector.load %arg6[%c0_54, %c8, %c0_55] : memref<1x32x256xf32, #tpu.memory_space<vmem>>, vector<1x8x256xf32>
    %207 = vector.shape_cast %206 : vector<1x8x256xf32> to vector<8x256xf32>
    %208 = vector.shape_cast %205 : vector<8x256xf32> to vector<1x8x256xf32>
    tpu.vector_store %arg6[%c0_54, %c8, %c0_55], %208 {strides = array<i32>} : memref<1x32x256xf32, #tpu.memory_space<vmem>>, vector<1x8x256xf32>,
    %209 = vector.extract_strided_slice %10 {offsets = [16, 0], sizes = [8, 256], strides = [1, 1]} : vector<32x256xf32> to vector<8x256xf32>
    %cst_56 = arith.constant dense<0.000000e+00> : vector<8x256xf32>
    %210 = tpu.matmul %22, %209, %cst_56 {dimension_numbers = #tpu.dot_dimension_numbers<[0], [0], [1], [1], [0, 1, 1, 1], [], []>} : vector<8x8xf32>, vector<8x256xf32>, vector<8x256xf32> -> vector<8x256xf32>
    %211 = vector.extract_strided_slice %209 {offsets = [0, 0], sizes = [1, 256], strides = [1, 1]} : vector<8x256xf32> to vector<1x256xf32>
    %212 = vector.extract_strided_slice %118 {offsets = [0, 0], sizes = [8, 256], strides = [1, 1]} : vector<64x256xf32> to vector<8x256xf32>
    %213 = vector.broadcast %211 : vector<1x256xf32> to vector<8x256xf32>
    %214 = arith.mulf %213, %212 : vector<8x256xf32>
    %215 = arith.addf %210, %214 : vector<8x256xf32>
    %216 = vector.extract_strided_slice %209 {offsets = [1, 0], sizes = [1, 256], strides = [1, 1]} : vector<8x256xf32> to vector<1x256xf32>
    %217 = vector.extract_strided_slice %118 {offsets = [8, 0], sizes = [8, 256], strides = [1, 1]} : vector<64x256xf32> to vector<8x256xf32>
    %218 = vector.broadcast %216 : vector<1x256xf32> to vector<8x256xf32>
    %219 = arith.mulf %218, %217 : vector<8x256xf32>
    %220 = arith.addf %215, %219 : vector<8x256xf32>
    %221 = vector.extract_strided_slice %209 {offsets = [2, 0], sizes = [1, 256], strides = [1, 1]} : vector<8x256xf32> to vector<1x256xf32>
    %222 = vector.extract_strided_slice %118 {offsets = [16, 0], sizes = [8, 256], strides = [1, 1]} : vector<64x256xf32> to vector<8x256xf32>
    %223 = vector.broadcast %221 : vector<1x256xf32> to vector<8x256xf32>
    %224 = arith.mulf %223, %222 : vector<8x256xf32>
    %225 = arith.addf %220, %224 : vector<8x256xf32>
    %226 = vector.extract_strided_slice %209 {offsets = [3, 0], sizes = [1, 256], strides = [1, 1]} : vector<8x256xf32> to vector<1x256xf32>
    %227 = vector.extract_strided_slice %118 {offsets = [24, 0], sizes = [8, 256], strides = [1, 1]} : vector<64x256xf32> to vector<8x256xf32>
    %228 = vector.broadcast %226 : vector<1x256xf32> to vector<8x256xf32>
    %229 = arith.mulf %228, %227 : vector<8x256xf32>
    %230 = arith.addf %225, %229 : vector<8x256xf32>
    %231 = vector.extract_strided_slice %209 {offsets = [4, 0], sizes = [1, 256], strides = [1, 1]} : vector<8x256xf32> to vector<1x256xf32>
    %232 = vector.extract_strided_slice %118 {offsets = [32, 0], sizes = [8, 256], strides = [1, 1]} : vector<64x256xf32> to vector<8x256xf32>
    %233 = vector.broadcast %231 : vector<1x256xf32> to vector<8x256xf32>
    %234 = arith.mulf %233, %232 : vector<8x256xf32>
    %235 = arith.addf %230, %234 : vector<8x256xf32>
    %236 = vector.extract_strided_slice %209 {offsets = [5, 0], sizes = [1, 256], strides = [1, 1]} : vector<8x256xf32> to vector<1x256xf32>
    %237 = vector.extract_strided_slice %118 {offsets = [40, 0], sizes = [8, 256], strides = [1, 1]} : vector<64x256xf32> to vector<8x256xf32>
    %238 = vector.broadcast %236 : vector<1x256xf32> to vector<8x256xf32>
    %239 = arith.mulf %238, %237 : vector<8x256xf32>
    %240 = arith.addf %235, %239 : vector<8x256xf32>
    %241 = vector.extract_strided_slice %209 {offsets = [6, 0], sizes = [1, 256], strides = [1, 1]} : vector<8x256xf32> to vector<1x256xf32>
    %242 = vector.extract_strided_slice %118 {offsets = [48, 0], sizes = [8, 256], strides = [1, 1]} : vector<64x256xf32> to vector<8x256xf32>
    %243 = vector.broadcast %241 : vector<1x256xf32> to vector<8x256xf32>
    %244 = arith.mulf %243, %242 : vector<8x256xf32>
    %245 = arith.addf %240, %244 : vector<8x256xf32>
    %246 = vector.extract_strided_slice %209 {offsets = [7, 0], sizes = [1, 256], strides = [1, 1]} : vector<8x256xf32> to vector<1x256xf32>
    %247 = vector.extract_strided_slice %118 {offsets = [56, 0], sizes = [8, 256], strides = [1, 1]} : vector<64x256xf32> to vector<8x256xf32>
    %248 = vector.broadcast %246 : vector<1x256xf32> to vector<8x256xf32>
    %249 = arith.mulf %248, %247 : vector<8x256xf32>
    %250 = arith.addf %245, %249 : vector<8x256xf32>
    %c0_57 = arith.constant 0 : index
    %c16 = arith.constant 16 : index
    %c0_58 = arith.constant 0 : index
    %251 = vector.load %arg6[%c0_57, %c16, %c0_58] : memref<1x32x256xf32, #tpu.memory_space<vmem>>, vector<1x8x256xf32>
    %252 = vector.shape_cast %251 : vector<1x8x256xf32> to vector<8x256xf32>
    %253 = vector.shape_cast %250 : vector<8x256xf32> to vector<1x8x256xf32>
    tpu.vector_store %arg6[%c0_57, %c16, %c0_58], %253 {strides = array<i32>} : memref<1x32x256xf32, #tpu.memory_space<vmem>>, vector<1x8x256xf32>,
    %254 = vector.extract_strided_slice %10 {offsets = [24, 0], sizes = [8, 256], strides = [1, 1]} : vector<32x256xf32> to vector<8x256xf32>
    %cst_59 = arith.constant dense<0.000000e+00> : vector<8x256xf32>
    %255 = tpu.matmul %22, %254, %cst_59 {dimension_numbers = #tpu.dot_dimension_numbers<[0], [0], [1], [1], [0, 1, 1, 1], [], []>} : vector<8x8xf32>, vector<8x256xf32>, vector<8x256xf32> -> vector<8x256xf32>
    %256 = vector.extract_strided_slice %254 {offsets = [0, 0], sizes = [1, 256], strides = [1, 1]} : vector<8x256xf32> to vector<1x256xf32>
    %257 = vector.extract_strided_slice %118 {offsets = [0, 0], sizes = [8, 256], strides = [1, 1]} : vector<64x256xf32> to vector<8x256xf32>
    %258 = vector.broadcast %256 : vector<1x256xf32> to vector<8x256xf32>
    %259 = arith.mulf %258, %257 : vector<8x256xf32>
    %260 = arith.addf %255, %259 : vector<8x256xf32>
    %261 = vector.extract_strided_slice %254 {offsets = [1, 0], sizes = [1, 256], strides = [1, 1]} : vector<8x256xf32> to vector<1x256xf32>
    %262 = vector.extract_strided_slice %118 {offsets = [8, 0], sizes = [8, 256], strides = [1, 1]} : vector<64x256xf32> to vector<8x256xf32>
    %263 = vector.broadcast %261 : vector<1x256xf32> to vector<8x256xf32>
    %264 = arith.mulf %263, %262 : vector<8x256xf32>
    %265 = arith.addf %260, %264 : vector<8x256xf32>
    %266 = vector.extract_strided_slice %254 {offsets = [2, 0], sizes = [1, 256], strides = [1, 1]} : vector<8x256xf32> to vector<1x256xf32>
    %267 = vector.extract_strided_slice %118 {offsets = [16, 0], sizes = [8, 256], strides = [1, 1]} : vector<64x256xf32> to vector<8x256xf32>
    %268 = vector.broadcast %266 : vector<1x256xf32> to vector<8x256xf32>
    %269 = arith.mulf %268, %267 : vector<8x256xf32>
    %270 = arith.addf %265, %269 : vector<8x256xf32>
    %271 = vector.extract_strided_slice %254 {offsets = [3, 0], sizes = [1, 256], strides = [1, 1]} : vector<8x256xf32> to vector<1x256xf32>
    %272 = vector.extract_strided_slice %118 {offsets = [24, 0], sizes = [8, 256], strides = [1, 1]} : vector<64x256xf32> to vector<8x256xf32>
    %273 = vector.broadcast %271 : vector<1x256xf32> to vector<8x256xf32>
    %274 = arith.mulf %273, %272 : vector<8x256xf32>
    %275 = arith.addf %270, %274 : vector<8x256xf32>
    %276 = vector.extract_strided_slice %254 {offsets = [4, 0], sizes = [1, 256], strides = [1, 1]} : vector<8x256xf32> to vector<1x256xf32>
    %277 = vector.extract_strided_slice %118 {offsets = [32, 0], sizes = [8, 256], strides = [1, 1]} : vector<64x256xf32> to vector<8x256xf32>
    %278 = vector.broadcast %276 : vector<1x256xf32> to vector<8x256xf32>
    %279 = arith.mulf %278, %277 : vector<8x256xf32>
    %280 = arith.addf %275, %279 : vector<8x256xf32>
    %281 = vector.extract_strided_slice %254 {offsets = [5, 0], sizes = [1, 256], strides = [1, 1]} : vector<8x256xf32> to vector<1x256xf32>
    %282 = vector.extract_strided_slice %118 {offsets = [40, 0], sizes = [8, 256], strides = [1, 1]} : vector<64x256xf32> to vector<8x256xf32>
    %283 = vector.broadcast %281 : vector<1x256xf32> to vector<8x256xf32>
    %284 = arith.mulf %283, %282 : vector<8x256xf32>
    %285 = arith.addf %280, %284 : vector<8x256xf32>
    %286 = vector.extract_strided_slice %254 {offsets = [6, 0], sizes = [1, 256], strides = [1, 1]} : vector<8x256xf32> to vector<1x256xf32>
    %287 = vector.extract_strided_slice %118 {offsets = [48, 0], sizes = [8, 256], strides = [1, 1]} : vector<64x256xf32> to vector<8x256xf32>
    %288 = vector.broadcast %286 : vector<1x256xf32> to vector<8x256xf32>
    %289 = arith.mulf %288, %287 : vector<8x256xf32>
    %290 = arith.addf %285, %289 : vector<8x256xf32>
    %291 = vector.extract_strided_slice %254 {offsets = [7, 0], sizes = [1, 256], strides = [1, 1]} : vector<8x256xf32> to vector<1x256xf32>
    %292 = vector.extract_strided_slice %118 {offsets = [56, 0], sizes = [8, 256], strides = [1, 1]} : vector<64x256xf32> to vector<8x256xf32>
    %293 = vector.broadcast %291 : vector<1x256xf32> to vector<8x256xf32>
    %294 = arith.mulf %293, %292 : vector<8x256xf32>
    %295 = arith.addf %290, %294 : vector<8x256xf32>
    %c0_60 = arith.constant 0 : index
    %c24 = arith.constant 24 : index
    %c0_61 = arith.constant 0 : index
    %296 = vector.load %arg6[%c0_60, %c24, %c0_61] : memref<1x32x256xf32, #tpu.memory_space<vmem>>, vector<1x8x256xf32>
    %297 = vector.shape_cast %296 : vector<1x8x256xf32> to vector<8x256xf32>
    %298 = vector.shape_cast %295 : vector<8x256xf32> to vector<1x8x256xf32>
    tpu.vector_store %arg6[%c0_60, %c24, %c0_61], %298 {strides = array<i32>} : memref<1x32x256xf32, #tpu.memory_space<vmem>>, vector<1x8x256xf32>,
    return
  }
  func.func @transform_0(%arg0: i32) -> (i32, i32, i32) {
    %c0_i32 = arith.constant 0 : i32
    %c0_i32_0 = arith.constant 0 : i32
    %c0_i32_1 = arith.constant 0 : i32
    return %arg0, %c0_i32, %c0_i32_0 : i32, i32, i32
  }
  func.func @transform_1(%arg0: i32) -> (i32, i32) {
    %c0_i32 = arith.constant 0 : i32
    %c0_i32_0 = arith.constant 0 : i32
    %c0_i32_1 = arith.constant 0 : i32
    return %c0_i32, %c0_i32_0 : i32, i32
  }
  func.func @transform_2(%arg0: i32) -> (i32, i32) {
    %c0_i32 = arith.constant 0 : i32
    %c0_i32_0 = arith.constant 0 : i32
    %c0_i32_1 = arith.constant 0 : i32
    return %c0_i32, %c0_i32_0 : i32, i32
  }
  func.func @transform_3(%arg0: i32) -> (i32, i32) {
    %c0_i32 = arith.constant 0 : i32
    %c0_i32_0 = arith.constant 0 : i32
    %c0_i32_1 = arith.constant 0 : i32
    return %c0_i32, %c0_i32_0 : i32, i32
  }
  func.func @transform_4(%arg0: i32) -> (i32, i32) {
    %c0_i32 = arith.constant 0 : i32
    %c0_i32_0 = arith.constant 0 : i32
    %c0_i32_1 = arith.constant 0 : i32
    return %c0_i32, %c0_i32_0 : i32, i32
  }
  func.func @transform_5(%arg0: i32) -> (i32, i32, i32) {
    %c0_i32 = arith.constant 0 : i32
    %c0_i32_0 = arith.constant 0 : i32
    %c0_i32_1 = arith.constant 0 : i32
    return %arg0, %c0_i32, %c0_i32_0 : i32, i32, i32
  }
}

</mosaic_0001>

<llo_original>
// kernel: tpu_custom_call.1
$region0: #{tpu_custom_call.1}
  #allocation0 [shape = 'u32[]', space=smem, size = 0x4, offset = 0x4, fixed_abs, tag = 'smem constant byte address 0x4 - core index']
  #allocation1 [shape = 'u32[144,128]{1,0:T(1,128)}', space=vmem, size = 0x12000, scoped, tag = 'internal scratch']
  %s0 = inlined_call_operand.vmem [shape: f32[2,4,256], index: 0, kind: input, shape index: {}]
  %s1 = inlined_call_operand.vmem [shape: f32[48,4], index: 1, kind: input, shape index: {}]
  %s2 = inlined_call_operand.vmem [shape: f32[48,1], index: 2, kind: input, shape index: {}]
  %s3 = inlined_call_operand.vmem [shape: f32[48,1], index: 3, kind: input, shape index: {}]
  %s4 = inlined_call_operand.vmem [shape: f32[64,72], index: 4, kind: input, shape index: {}]
  %s5 = inlined_call_operand.hbm [shape: f32[2,32,256], index: 5, kind: output, shape index: {}]
  %s6 = sld [smem:[#allocation0]]
  $region53: #{tpu_custom_call.1} parent=0
    _
  %s8 = ssub.s32 1, %s6
  %s9 = scalar_select 0, %s8, %s6
  $region1: #{tpu_custom_call.1} parent=0
    #allocation2 [shape = 'u8[65536]{0}', space=vmem, size = 0x10000, scoped, tag = 'output window, operand 0']
    #allocation3 [shape = 's32[2]{0}', space=sflag, size = 0x8, scoped, tag = 'scoped memory for tpu_custom_call.1']
    %10 = vsyncpa [#allocation3], 0
    %s11 = scalar_lea.sflag [#allocation3], 1
    %12 = vsyncpa %s11, 0
    loop: start=0, step=1, limit=4
    $region2: #{tpu_custom_call.1} parent=1 // loop_pre_header
      _
    $region3: #{tpu_custom_call.1} parent=1 // loop_header
      %s14 = sphi 0, %s18
      %p15 = scmp.ge.s32.totalorder %s14, 4
      %s24 = sphi 0, %s26
      %s27 = sphi 0, %s24
      %s28 = sphi 0, %s27
      %s44 = sphi 0, %s28
      %s48 = sphi 0, %s48
      %s50 = sphi 0, %s48
      %s51 = sphi 0, %s50
      %s65 = sphi 0, %s51
      %s69 = sphi 0, %s69
      %s71 = sphi 0, %s69
      %s72 = sphi 0, %s71
      %s86 = sphi 0, %s72
      %s90 = sphi 0, %s90
      %s92 = sphi 0, %s90
      %s93 = sphi 0, %s92
      %s107 = sphi 0, %s93
      %s111 = sphi 0, %s111
      %s113 = sphi 0, %s111
      %s114 = sphi 0, %s113
      %s128 = sphi 0, %s114
      %s134 = sphi 0, %s136
      %s137 = sphi 0, %s134
      %s138 = sphi 0, %s137
      %s154 = sphi 0, %s138
    $region4: #{tpu_custom_call.1} parent=1 // loop_header_branch
      %17 = sbr.rel (%p15) target = $region8
    $region5: #{tpu_custom_call.1} parent=1 // loop_body
      %s19 = ssub.s32 %s14, 1
      %s20 = ssub.s32 %s14, 2
      %s21 = sadd.s32 %s14, 1
      %s22 = ssub.s32 %s14, %s21
      %p23 = scmp.eq.s32.totalorder %s22, 0
      %s25 = sadd.s32 %s24, 1
      %s26 = scalar_select %p23, %s24, %s25
      %p29 = pneg %p23
      %p30 = scmp.eq.s32.totalorder %s14, 1
      %p31 = por %p29, %p30
      %p32 = scmp.ne.s32.totalorder %s24, %s27
      %p33 = scmp.eq.s32.totalorder %s14, 0
      %p34 = por %p32, %p33
      %p35 = scmp.ne.s32.totalorder %s24, %s27
      %p36 = scmp.eq.s32.totalorder %s19, 1
      %p37 = por %p35, %p36
      %p38 = scmp.ne.s32.totalorder %s27, %s28
      %p39 = scmp.eq.s32.totalorder %s19, 0
      %p40 = por %p38, %p39
      %p41 = scmp.ne.s32.totalorder %s27, %s28
      %p42 = scmp.eq.s32.totalorder %s20, 1
      %p43 = por %p41, %p42
      %p45 = scmp.ne.s32.totalorder %s28, %s44
      %p46 = scmp.eq.s32.totalorder %s20, 0
      %p47 = por %p45, %p46
      %s49 = sadd.s32 %s48, 1
      %p52 = scmp.eq.s32.totalorder %s14, 1
      %p53 = scmp.ne.s32.totalorder %s48, %s50
      %p54 = scmp.eq.s32.totalorder %s14, 0
      %p55 = por %p53, %p54
      %p56 = scmp.ne.s32.totalorder %s48, %s50
      %p57 = scmp.eq.s32.totalorder %s19, 1
      %p58 = por %p56, %p57
      %p59 = scmp.ne.s32.totalorder %s50, %s51
      %p60 = scmp.eq.s32.totalorder %s19, 0
      %p61 = por %p59, %p60
      %p62 = scmp.ne.s32.totalorder %s50, %s51
      %p63 = scmp.eq.s32.totalorder %s20, 1
      %p64 = por %p62, %p63
      %p66 = scmp.ne.s32.totalorder %s51, %s65
      %p67 = scmp.eq.s32.totalorder %s20, 0
      %p68 = por %p66, %p67
      %s70 = sadd.s32 %s69, 1
      %p73 = scmp.eq.s32.totalorder %s14, 1
      %p74 = scmp.ne.s32.totalorder %s69, %s71
      %p75 = scmp.eq.s32.totalorder %s14, 0
      %p76 = por %p74, %p75
      %p77 = scmp.ne.s32.totalorder %s69, %s71
      %p78 = scmp.eq.s32.totalorder %s19, 1
      %p79 = por %p77, %p78
      %p80 = scmp.ne.s32.totalorder %s71, %s72
      %p81 = scmp.eq.s32.totalorder %s19, 0
      %p82 = por %p80, %p81
      %p83 = scmp.ne.s32.totalorder %s71, %s72
      %p84 = scmp.eq.s32.totalorder %s20, 1
      %p85 = por %p83, %p84
      %p87 = scmp.ne.s32.totalorder %s72, %s86
      %p88 = scmp.eq.s32.totalorder %s20, 0
      %p89 = por %p87, %p88
      %s91 = sadd.s32 %s90, 1
      %p94 = scmp.eq.s32.totalorder %s14, 1
      %p95 = scmp.ne.s32.totalorder %s90, %s92
      %p96 = scmp.eq.s32.totalorder %s14, 0
      %p97 = por %p95, %p96
      %p98 = scmp.ne.s32.totalorder %s90, %s92
      %p99 = scmp.eq.s32.totalorder %s19, 1
      %p100 = por %p98, %p99
      %p101 = scmp.ne.s32.totalorder %s92, %s93
      %p102 = scmp.eq.s32.totalorder %s19, 0
      %p103 = por %p101, %p102
      %p104 = scmp.ne.s32.totalorder %s92, %s93
      %p105 = scmp.eq.s32.totalorder %s20, 1
      %p106 = por %p104, %p105
      %p108 = scmp.ne.s32.totalorder %s93, %s107
      %p109 = scmp.eq.s32.totalorder %s20, 0
      %p110 = por %p108, %p109
      %s112 = sadd.s32 %s111, 1
      %p115 = scmp.eq.s32.totalorder %s14, 1
      %p116 = scmp.ne.s32.totalorder %s111, %s113
      %p117 = scmp.eq.s32.totalorder %s14, 0
      %p118 = por %p116, %p117
      %p119 = scmp.ne.s32.totalorder %s111, %s113
      %p120 = scmp.eq.s32.totalorder %s19, 1
      %p121 = por %p119, %p120
      %p122 = scmp.ne.s32.totalorder %s113, %s114
      %p123 = scmp.eq.s32.totalorder %s19, 0
      %p124 = por %p122, %p123
      %p125 = scmp.ne.s32.totalorder %s113, %s114
      %p126 = scmp.eq.s32.totalorder %s20, 1
      %p127 = por %p125, %p126
      %p129 = scmp.ne.s32.totalorder %s114, %s128
      %p130 = scmp.eq.s32.totalorder %s20, 0
      %p131 = por %p129, %p130
      %s132 = ssub.s32 %s14, %s21
      %p133 = scmp.eq.s32.totalorder %s132, 0
      %s135 = sadd.s32 %s134, 1
      %s136 = scalar_select %p133, %s134, %s135
      %p139 = pneg %p133
      %p140 = scmp.eq.s32.totalorder %s14, 1
      %p141 = por %p139, %p140
      %p142 = scmp.ne.s32.totalorder %s134, %s137
      %p143 = scmp.eq.s32.totalorder %s14, 0
      %p144 = por %p142, %p143
      %p145 = scmp.ne.s32.totalorder %s134, %s137
      %p146 = scmp.eq.s32.totalorder %s19, 1
      %p147 = por %p145, %p146
      %p148 = scmp.ne.s32.totalorder %s137, %s138
      %p149 = scmp.eq.s32.totalorder %s19, 0
      %p150 = por %p148, %p149
      %p151 = scmp.ne.s32.totalorder %s137, %s138
      %p152 = scmp.eq.s32.totalorder %s20, 1
      %p153 = por %p151, %p152
      %p155 = scmp.ne.s32.totalorder %s138, %s154
      %p156 = scmp.eq.s32.totalorder %s20, 0
      %p157 = por %p155, %p156
      %p158 = scmp.le.s32.totalorder 1, %s14
      %p159 = scmp.lt.s32.totalorder %s14, 3
      %p160 = pnand %p158, %p159
      %p161 = pneg %p160
      // Predicated region
      $region9: #{tpu_custom_call.1} parent=5 // pred_check
        _
      $region10: #{tpu_custom_call.1} parent=5 // pred_check_branch
        %163 = sbr.rel (%p160) target = $region12
      $region11: #{tpu_custom_call.1} parent=5 // pred_region
        %s164 = ssub.s32 %s14, 1
        // Predicated region
        $region13: #{tpu_custom_call.1} parent=11 // pred_check
          %p165 = pneg %p61
        $region14: #{tpu_custom_call.1} parent=11 // pred_check_branch
          %167 = sbr.rel (%p165) target = $region16
        $region15: #{tpu_custom_call.1} parent=11 // pred_region
          _
        $region16: #{tpu_custom_call.1} parent=11 // pred_fallthru
          _
        // Predicated region
        $region17: #{tpu_custom_call.1} parent=11 // pred_check
          %p168 = pneg %p82
        $region18: #{tpu_custom_call.1} parent=11 // pred_check_branch
          %170 = sbr.rel (%p168) target = $region20
        $region19: #{tpu_custom_call.1} parent=11 // pred_region
          _
        $region20: #{tpu_custom_call.1} parent=11 // pred_fallthru
          _
        // Predicated region
        $region21: #{tpu_custom_call.1} parent=11 // pred_check
          %p171 = pneg %p103
        $region22: #{tpu_custom_call.1} parent=11 // pred_check_branch
          %173 = sbr.rel (%p171) target = $region24
        $region23: #{tpu_custom_call.1} parent=11 // pred_region
          _
        $region24: #{tpu_custom_call.1} parent=11 // pred_fallthru
          _
        // Predicated region
        $region25: #{tpu_custom_call.1} parent=11 // pred_check
          %p174 = pneg %p124
        $region26: #{tpu_custom_call.1} parent=11 // pred_check_branch
          %176 = sbr.rel (%p174) target = $region28
        $region27: #{tpu_custom_call.1} parent=11 // pred_region
          _
        $region28: #{tpu_custom_call.1} parent=11 // pred_fallthru
          _
      $region12: #{tpu_custom_call.1} parent=5 // pred_fallthru
        _
      %p177 = scmp.lt.s32.totalorder %s14, 2
      // Predicated region
      $region29: #{tpu_custom_call.1} parent=5 // pred_check
        %p178 = pneg %p177
      $region30: #{tpu_custom_call.1} parent=5 // pred_check_branch
        %180 = sbr.rel (%p178) target = $region32
      $region31: #{tpu_custom_call.1} parent=5 // pred_region
        // Predicated region
        $region33: #{tpu_custom_call.1} parent=31 // pred_check
          %p181 = pneg %p34
        $region34: #{tpu_custom_call.1} parent=31 // pred_check_branch
          %183 = sbr.rel (%p181) target = $region36
        $region35: #{tpu_custom_call.1} parent=31 // pred_region
          %p184 = scmp.lt.s32.totalorder %s14, 1
          %s185 = scalar_select %p184, %s14, 1
          %s186 = smul.addr %s185, 2
          %s187 = smul.addr %s186, 4
          %s188 = scalar_lea.vmem %s0, %s187
        $region36: #{tpu_custom_call.1} parent=31 // pred_fallthru
          _
      $region32: #{tpu_custom_call.1} parent=5 // pred_fallthru
        _
      %p189 = scmp.le.s32.totalorder 1, %s14
      %p190 = scmp.lt.s32.totalorder %s14, 3
      %p191 = pnand %p189, %p190
      %p192 = pneg %p191
      // Predicated region
      $region37: #{tpu_custom_call.1} parent=5 // pred_check
        _
      $region38: #{tpu_custom_call.1} parent=5 // pred_check_branch
        %194 = sbr.rel (%p191) target = $region40
      $region39: #{tpu_custom_call.1} parent=5 // pred_region
        %s195 = ssub.s32 %s14, 1
        %p196 = scmp.lt.s32.totalorder %s19, 1
        %s197 = scalar_select %p196, %s19, 1
        %s198 = smul.addr %s197, 2
        %s199 = smul.addr %s198, 4
        %s200 = scalar_lea.vmem %s0, %s199
        %p201 = pneg %p40
        %p202 = pneg %p37
        %p203 = pneg %p61
        %p204 = pneg %p58
        %p205 = pneg %p82
        %p206 = pneg %p79
        %p207 = pneg %p103
        %p208 = pneg %p100
        %p209 = pneg %p124
        %p210 = pneg %p121
        %p211 = pneg %p150
        %p212 = pneg %p147
        %s213 = sand.u32 %s137, 1
        %s214 = scalar_lea.sflag [#allocation3], %s213
        %s215 = sand.u32 %s137, 1
        %s216 = smul.addr %s215, 64
        %s217 = scalar_lea.vmem [#allocation2], %s216
        %p218 = scmp.lt.s32.totalorder %s19, 1
        %s219 = scalar_select %p218, %s19, 1
        %s220 = smul.addr %s219, 2
        %s221 = smul.addr %s220, 4
        %s222 = scalar_lea.vmem %s0, %s221
        %v223 = vld [vmem:[%s222] sm:$0xff]
        %v224 = vld [vmem:[%s1] sm:$0xff]
        %v225 = vld [vmem:[%s1 + $0x8] sm:$0xff]
        %v226 = vld [vmem:[%s1 + $0x10] sm:$0xff]
        %v227 = vld [vmem:[%s1 + $0x18] sm:$0xff]
        %v228 = vld [vmem:[%s1 + $0x20] sm:$0xff]
        %v229 = vld [vmem:[%s1 + $0x28] sm:$0xff]
        %v231 = vcombine.high %v223, %v223
        %vm232 = vcmask 31744
        %v234 = vsel %vm232, %v224, 0
        %v237 = vsel %vm232, %v225, 0
        %v240 = vsel %vm232, %v226, 0
        %v243 = vsel %vm232, %v227, 0
        %v246 = vsel %vm232, %v228, 0
        %v249 = vsel %vm232, %v229, 0
        %vm251 = vcmask 1043456
        %v252 = vsel %vm251, %v223, 0
        %v254 = vsel %vm251, %v231, 0
        %256 = vmatprep.subr.mxu0 %v254
        %257 = vmatpush1.msra.mxu0 %v252
        %258 = vmatprep.subr.mxu0 0.0
        %259 = vmatpush1.msra.mxu0 0.0
        %260 = vmatprep.subr.mxu0 0.0
        %261 = vmatpush1.msra.mxu0 0.0
        %262 = vmatprep.subr.mxu0 0.0
        %263 = vmatpush1.msra.mxu0 0.0
        %264 = vmatprep.subr.mxu0 0.0
        %265 = vmatpush1.msra.mxu0 0.0
        %266 = vmatprep.subr.mxu0 0.0
        %267 = vmatpush1.msra.mxu0 0.0
        %268 = vmatprep.subr.mxu0 0.0
        %269 = vmatpush1.msra.mxu0 0.0
        %270 = vmatprep.subr.mxu0 0.0
        %271 = vmatpush1.msra.mxu0 0.0
        %272 = vmatprep.subr.mxu0 0.0
        %273 = vmatpush1.msra.mxu0 0.0
        %274 = vmatprep.subr.mxu0 0.0
        %275 = vmatpush1.msra.mxu0 0.0
        %276 = vmatprep.subr.mxu0 0.0
        %277 = vmatpush1.msra.mxu0 0.0
        %278 = vmatprep.subr.mxu0 0.0
        %279 = vmatpush1.msra.mxu0 0.0
        %280 = vmatprep.subr.mxu0 0.0
        %281 = vmatpush1.msra.mxu0 0.0
        %282 = vmatprep.subr.mxu0 0.0
        %283 = vmatpush1.msra.mxu0 0.0
        %284 = vmatprep.subr.mxu0 0.0
        %285 = vmatpush1.msra.mxu0 0.0
        %286 = vmatprep.subr.mxu0 0.0
        %287 = vmatpush1.msra.mxu0 0.0
        %288 = vmatprep.subr.mxu0 0.0
        %289 = vmatpush1.msra.mxu0 0.0
        %290 = vmatprep.subr.mxu0 0.0
        %291 = vmatpush1.msra.mxu0 0.0
        %292 = vmatprep.subr.mxu0 0.0
        %293 = vmatpush1.msra.mxu0 0.0
        %294 = vmatprep.subr.mxu0 0.0
        %295 = vmatpush1.msra.mxu0 0.0
        %296 = vmatprep.subr.mxu0 0.0
        %297 = vmatpush1.msra.mxu0 0.0
        %298 = vmatprep.subr.mxu0 0.0
        %299 = vmatpush1.msra.mxu0 0.0
        %300 = vmatprep.subr.mxu0 0.0
        %301 = vmatpush1.msra.mxu0 0.0
        %302 = vmatprep.subr.mxu0 0.0
        %303 = vmatpush1.msra.mxu0 0.0
        %304 = vmatprep.subr.mxu0 0.0
        %305 = vmatpush1.msra.mxu0 0.0
        %306 = vmatprep.subr.mxu0 0.0
        %307 = vmatpush1.msra.mxu0 0.0
        %308 = vmatprep.subr.mxu0 0.0
        %309 = vmatpush1.msra.mxu0 0.0
        %310 = vmatprep.subr.mxu0 0.0
        %311 = vmatpush1.msra.mxu0 0.0
        %312 = vmatprep.subr.mxu0 0.0
        %313 = vmatpush1.msra.mxu0 0.0
        %314 = vmatprep.subr.mxu0 0.0
        %315 = vmatpush1.msra.mxu0 0.0
        %316 = vmatprep.subr.mxu0 0.0
        %317 = vmatpush1.msra.mxu0 0.0
        %318 = vmatprep.subr.mxu0 0.0
        %319 = vmatpush1.msra.mxu0 0.0
        %320 = vmatprep.mubr.f32.mxu0 0.0
        %321 = vmatmul.mubr.f32.gmra.mrb[0].mxu0 %v234
        %v322 = vpop.f32.mrb[0].mxu0
        %v323 = vadd.f32 0.0, %v322
        %v324 = vpop.f32.mrb[0].mxu0
        %v325 = vadd.f32 0.0, %v324
        %326 = vmatprep.mubr.f32.mxu0 0.0
        %327 = vmatmul.mubr.f32.gmra.mrb[0].mxu0 %v237
        %v328 = vpop.f32.mrb[0].mxu0
        %v329 = vadd.f32 0.0, %v328
        %v330 = vpop.f32.mrb[0].mxu0
        %v331 = vadd.f32 0.0, %v330
        %332 = vmatprep.mubr.f32.mxu0 0.0
        %333 = vmatmul.mubr.f32.gmra.mrb[0].mxu0 %v240
        %v334 = vpop.f32.mrb[0].mxu0
        %v335 = vadd.f32 0.0, %v334
        %v336 = vpop.f32.mrb[0].mxu0
        %v337 = vadd.f32 0.0, %v336
        %338 = vmatprep.mubr.f32.mxu0 0.0
        %339 = vmatmul.mubr.f32.gmra.mrb[0].mxu0 %v243
        %v340 = vpop.f32.mrb[0].mxu0
        %v341 = vadd.f32 0.0, %v340
        %v342 = vpop.f32.mrb[0].mxu0
        %v343 = vadd.f32 0.0, %v342
        %344 = vmatprep.mubr.f32.mxu0 0.0
        %345 = vmatmul.mubr.f32.gmra.mrb[0].mxu0 %v246
        %v346 = vpop.f32.mrb[0].mxu0
        %v347 = vadd.f32 0.0, %v346
        %v348 = vpop.f32.mrb[0].mxu0
        %v349 = vadd.f32 0.0, %v348
        %350 = vmatprep.mubr.f32.mxu0 0.0
        %351 = vmatmul.mubr.f32.gmra.mrb[0].mxu0 %v249
        %v352 = vpop.f32.mrb[0].mxu0
        %v353 = vadd.f32 0.0, %v352
        %v354 = vpop.f32.mrb[0].mxu0
        %v355 = vadd.f32 0.0, %v354
        %356 = vdwg.mxu0
        %v357 = vld [vmem:[%s2] sm:$0xff]
        %v358 = vld [vmem:[%s2 + $0x8] sm:$0xff]
        %v359 = vld [vmem:[%s2 + $0x10] sm:$0xff]
        %v360 = vld [vmem:[%s2 + $0x18] sm:$0xff]
        %v361 = vld [vmem:[%s2 + $0x20] sm:$0xff]
        %v362 = vld [vmem:[%s2 + $0x28] sm:$0xff]
        %364 = vset.pattern.permute.xlu0 0
        %365 = vperm.xlu0 %364, %v357
        %v366 = vpop.permute.xlu0 %365
        %369 = vset.pattern.permute.xlu0 0
        %370 = vperm.xlu0 %369, %v358
        %v371 = vpop.permute.xlu0 %370
        %374 = vset.pattern.permute.xlu0 0
        %375 = vperm.xlu0 %374, %v359
        %v376 = vpop.permute.xlu0 %375
        %379 = vset.pattern.permute.xlu0 0
        %380 = vperm.xlu0 %379, %v360
        %v381 = vpop.permute.xlu0 %380
        %384 = vset.pattern.permute.xlu0 0
        %385 = vperm.xlu0 %384, %v361
        %v386 = vpop.permute.xlu0 %385
        %389 = vset.pattern.permute.xlu0 0
        %390 = vperm.xlu0 %389, %v362
        %v391 = vpop.permute.xlu0 %390
        %v393 = vmul.f32 %v323, %v366
        %v394 = vmul.f32 %v325, %v366
        %v395 = vmul.f32 %v329, %v371
        %v396 = vmul.f32 %v331, %v371
        %v397 = vmul.f32 %v335, %v376
        %v398 = vmul.f32 %v337, %v376
        %v399 = vmul.f32 %v341, %v381
        %v400 = vmul.f32 %v343, %v381
        %v401 = vmul.f32 %v347, %v386
        %v402 = vmul.f32 %v349, %v386
        %v403 = vmul.f32 %v353, %v391
        %v404 = vmul.f32 %v355, %v391
        %v405 = vld [vmem:[%s3] sm:$0xff]
        %v406 = vld [vmem:[%s3 + $0x8] sm:$0xff]
        %v407 = vld [vmem:[%s3 + $0x10] sm:$0xff]
        %v408 = vld [vmem:[%s3 + $0x18] sm:$0xff]
        %v409 = vld [vmem:[%s3 + $0x20] sm:$0xff]
        %v410 = vld [vmem:[%s3 + $0x28] sm:$0xff]
        %412 = vset.pattern.permute.xlu0 0
        %413 = vperm.xlu0 %412, %v405
        %v414 = vpop.permute.xlu0 %413
        %417 = vset.pattern.permute.xlu0 0
        %418 = vperm.xlu0 %417, %v406
        %v419 = vpop.permute.xlu0 %418
        %422 = vset.pattern.permute.xlu0 0
        %423 = vperm.xlu0 %422, %v407
        %v424 = vpop.permute.xlu0 %423
        %427 = vset.pattern.permute.xlu0 0
        %428 = vperm.xlu0 %427, %v408
        %v429 = vpop.permute.xlu0 %428
        %432 = vset.pattern.permute.xlu0 0
        %433 = vperm.xlu0 %432, %v409
        %v434 = vpop.permute.xlu0 %433
        %437 = vset.pattern.permute.xlu0 0
        %438 = vperm.xlu0 %437, %v410
        %v439 = vpop.permute.xlu0 %438
        %v441 = vadd.f32 %v393, %v414
        %v442 = vadd.f32 %v394, %v414
        %v443 = vadd.f32 %v395, %v419
        %v444 = vadd.f32 %v396, %v419
        %v445 = vadd.f32 %v397, %v424
        %v446 = vadd.f32 %v398, %v424
        %v447 = vadd.f32 %v399, %v429
        %v448 = vadd.f32 %v400, %v429
        %v449 = vadd.f32 %v401, %v434
        %v450 = vadd.f32 %v402, %v434
        %v451 = vadd.f32 %v403, %v439
        %v452 = vadd.f32 %v404, %v439
        %v453 = vmax.f32 %v449, %v450
        %454 = vmax.xlane.f32.xlu0 %v453
        %v455 = vpop.xlane.xlu0 %454
        %v456 = vsub.f32 %v449, %v455
        %v457 = vsub.f32 %v450, %v455
        %v458 = vmul.f32 %v456, 1.442695
        %v459 = vpow.pop %v458
        %v460 = vmul.f32 %v457, 1.442695
        %v461 = vpow.pop %v460
        %v462 = vadd.f32 %v459, %v461
        %463 = vadd.xlane.f32.xlu0 %v462
        %v464 = vpop.xlane.xlu0 %463
        %v465 = vrcp.pop %v464
        %v466 = vmul.f32 %v459, %v465
        %v467 = vmul.f32 %v461, %v465
        %468 = vmatprep.subr.mxu0 %v452
        %469 = vmatpush1.xpose.msra.mxu0 %v451
        %470 = vmatprep.subr.mxu0 0.0
        %471 = vmatpush1.xpose.msra.mxu0 0.0
        %472 = vmatprep.subr.mxu0 0.0
        %473 = vmatpush1.xpose.msra.mxu0 0.0
        %474 = vmatprep.subr.mxu0 0.0
        %475 = vmatpush1.xpose.msra.mxu0 0.0
        %476 = vmatprep.subr.mxu0 0.0
        %477 = vmatpush1.xpose.msra.mxu0 0.0
        %478 = vmatprep.subr.mxu0 0.0
        %479 = vmatpush1.xpose.msra.mxu0 0.0
        %480 = vmatprep.subr.mxu0 0.0
        %481 = vmatpush1.xpose.msra.mxu0 0.0
        %482 = vmatprep.subr.mxu0 0.0
        %483 = vmatpush1.xpose.msra.mxu0 0.0
        %484 = vmatprep.subr.mxu0 0.0
        %485 = vmatpush1.xpose.msra.mxu0 0.0
        %486 = vmatprep.subr.mxu0 0.0
        %487 = vmatpush1.xpose.msra.mxu0 0.0
        %488 = vmatprep.subr.mxu0 0.0
        %489 = vmatpush1.xpose.msra.mxu0 0.0
        %490 = vmatprep.subr.mxu0 0.0
        %491 = vmatpush1.xpose.msra.mxu0 0.0
        %492 = vmatprep.subr.mxu0 0.0
        %493 = vmatpush1.xpose.msra.mxu0 0.0
        %494 = vmatprep.subr.mxu0 0.0
        %495 = vmatpush1.xpose.msra.mxu0 0.0
        %496 = vmatprep.subr.mxu0 0.0
        %497 = vmatpush1.xpose.msra.mxu0 0.0
        %498 = vmatprep.subr.mxu0 0.0
        %499 = vmatpush1.xpose.msra.mxu0 0.0
        %500 = vmatprep.subr.mxu0 0.0
        %501 = vmatpush1.xpose.msra.mxu0 0.0
        %502 = vmatprep.subr.mxu0 0.0
        %503 = vmatpush1.xpose.msra.mxu0 0.0
        %504 = vmatprep.subr.mxu0 0.0
        %505 = vmatpush1.xpose.msra.mxu0 0.0
        %506 = vmatprep.subr.mxu0 0.0
        %507 = vmatpush1.xpose.msra.mxu0 0.0
        %508 = vmatprep.subr.mxu0 0.0
        %509 = vmatpush1.xpose.msra.mxu0 0.0
        %510 = vmatprep.subr.mxu0 0.0
        %511 = vmatpush1.xpose.msra.mxu0 0.0
        %512 = vmatprep.subr.mxu0 0.0
        %513 = vmatpush1.xpose.msra.mxu0 0.0
        %514 = vmatprep.subr.mxu0 0.0
        %515 = vmatpush1.xpose.msra.mxu0 0.0
        %516 = vmatprep.subr.mxu0 0.0
        %517 = vmatpush1.xpose.msra.mxu0 0.0
        %518 = vmatprep.subr.mxu0 0.0
        %519 = vmatpush1.xpose.msra.mxu0 0.0
        %520 = vmatprep.subr.mxu0 0.0
        %521 = vmatpush1.xpose.msra.mxu0 0.0
        %522 = vmatprep.subr.mxu0 0.0
        %523 = vmatpush1.xpose.msra.mxu0 0.0
        %524 = vmatprep.subr.mxu0 0.0
        %525 = vmatpush1.xpose.msra.mxu0 0.0
        %526 = vmatprep.subr.mxu0 0.0
        %527 = vmatpush1.xpose.msra.mxu0 0.0
        %528 = vmatprep.subr.mxu0 0.0
        %529 = vmatpush1.xpose.msra.mxu0 0.0
        %530 = vmatprep.subr.mxu0 0.0
        %531 = vmatpush1.xpose.msra.mxu0 0.0
        %532 = vmatprep.mubr.f32.mxu0 %v467
        %533 = vmatmul.mubr.f32.gmra.mrb[0].mxu0 %v466
        %v534 = vpop.f32.mrb[0].mxu0
        %v535 = vadd.f32 0.0, %v534
        %v536 = vpop.f32.mrb[0].mxu0
        %537 = vdwg.mxu0
        %v538 = vlaneseq
        %v539 = vand.u32 %v538, 127
        %v540 = vadd.s32 %v539, 128
        %v541 = vand.u32 %v539, 15
        %v542 = vand.u32 %v540, 15
        %545 = vrot.lane.b32.xlu0 %v451, 17
        %v546 = vpop.permute.xlu0 %545
        %547 = vrot.lane.b32.xlu0 %v452, 17
        %v548 = vpop.permute.xlu0 %547
        %vm549 = vcmask 138240
        %v550 = vsel %vm549, %v546, %v548
        %v553 = vsel %vm549, 0.0, %v546
        %v554 = vadd.s32 %v541, 4294967295
        %v555 = vadd.s32 %v542, 4294967295
        %vm556 = vcmp.ge.s32.totalorder %v554, 0
        %vm557 = vcmp.ge.s32.totalorder %v555, 0
        %vm558 = vcmp.le.s32.totalorder %v554, 15
        %vm559 = vcmp.le.s32.totalorder %v555, 15
        %vm560 = vmand %vm556, %vm558
        %vm561 = vmand %vm557, %vm559
        %v562 = vsel %vm560, %v553, 0.0
        %v563 = vsel %vm561, %v550, 0.0
        %564 = vrot.lane.b32.xlu0 %v451, 16
        %v565 = vpop.permute.xlu0 %564
        %566 = vrot.lane.b32.xlu0 %v452, 16
        %v567 = vpop.permute.xlu0 %566
        %vm568 = vcmask 130048
        %v569 = vsel %vm568, %v565, %v567
        %v572 = vsel %vm568, 0.0, %v565
        %573 = vrot.lane.b32.xlu0 %v451, 15
        %v574 = vpop.permute.xlu0 %573
        %575 = vrot.lane.b32.xlu0 %v452, 15
        %v576 = vpop.permute.xlu0 %575
        %vm577 = vcmask 121856
        %v578 = vsel %vm577, %v574, %v576
        %v581 = vsel %vm577, 0.0, %v574
        %v582 = vadd.s32 %v541, 1
        %v583 = vadd.s32 %v542, 1
        %vm584 = vcmp.ge.s32.totalorder %v582, 0
        %vm585 = vcmp.ge.s32.totalorder %v583, 0
        %vm586 = vcmp.le.s32.totalorder %v582, 15
        %vm587 = vcmp.le.s32.totalorder %v583, 15
        %vm588 = vmand %vm584, %vm586
        %vm589 = vmand %vm585, %vm587
        %v590 = vsel %vm588, %v581, 0.0
        %v591 = vsel %vm589, %v578, 0.0
        %592 = vrot.lane.b32.xlu0 %v451, 1
        %v593 = vpop.permute.xlu0 %592
        %594 = vrot.lane.b32.xlu0 %v452, 1
        %v595 = vpop.permute.xlu0 %594
        %vm596 = vcmask 7168
        %v597 = vsel %vm596, %v593, %v595
        %v600 = vsel %vm596, 0.0, %v593
        %v601 = vsel %vm560, %v600, 0.0
        %v602 = vsel %vm561, %v597, 0.0
        %603 = vrot.lane.b32.xlu0 %v451, 127
        %v604 = vpop.permute.xlu0 %603
        %605 = vrot.lane.b32.xlu0 %v452, 127
        %v606 = vpop.permute.xlu0 %605
        %vm607 = vcmask 1039360
        %v608 = vsel %vm607, %v604, %v606
        %v611 = vsel %vm607, %v606, 0.0
        %v612 = vsel %vm588, %v608, 0.0
        %v613 = vsel %vm589, %v611, 0.0
        %614 = vrot.lane.b32.xlu0 %v451, 113
        %v615 = vpop.permute.xlu0 %614
        %616 = vrot.lane.b32.xlu0 %v452, 113
        %v617 = vpop.permute.xlu0 %616
        %vm618 = vcmask 924672
        %v619 = vsel %vm618, %v615, %v617
        %v622 = vsel %vm618, %v617, 0.0
        %v623 = vsel %vm560, %v619, 0.0
        %v624 = vsel %vm561, %v622, 0.0
        %625 = vrot.lane.b32.xlu0 %v451, 112
        %v626 = vpop.permute.xlu0 %625
        %627 = vrot.lane.b32.xlu0 %v452, 112
        %v628 = vpop.permute.xlu0 %627
        %vm629 = vcmask 916480
        %v630 = vsel %vm629, %v626, %v628
        %v633 = vsel %vm629, %v628, 0.0
        %634 = vrot.lane.b32.xlu0 %v451, 111
        %v635 = vpop.permute.xlu0 %634
        %636 = vrot.lane.b32.xlu0 %v452, 111
        %v637 = vpop.permute.xlu0 %636
        %vm638 = vcmask 908288
        %v639 = vsel %vm638, %v635, %v637
        %v642 = vsel %vm638, %v637, 0.0
        %v643 = vsel %vm588, %v639, 0.0
        %v644 = vsel %vm589, %v642, 0.0
        %v645 = vld [vmem:[%s4] sm:$0xff]
        %v646 = vld [vmem:[%s4 + $0x8] sm:$0xff]
        %v647 = vld [vmem:[%s4 + $0x10] sm:$0xff]
        %v648 = vld [vmem:[%s4 + $0x18] sm:$0xff]
        %v649 = vld [vmem:[%s4 + $0x20] sm:$0xff]
        %v650 = vld [vmem:[%s4 + $0x28] sm:$0xff]
        %v651 = vld [vmem:[%s4 + $0x30] sm:$0xff]
        %v652 = vld [vmem:[%s4 + $0x38] sm:$0xff]
        %vm653 = vcmask 588800
        %v655 = vsel %vm653, %v645, 0
        %v658 = vsel %vm653, %v646, 0
        %v661 = vsel %vm653, %v647, 0
        %v664 = vsel %vm653, %v648, 0
        %v667 = vsel %vm653, %v649, 0
        %v670 = vsel %vm653, %v650, 0
        %v673 = vsel %vm653, %v651, 0
        %v676 = vsel %vm653, %v652, 0
        %678 = vmatprep.subr.mxu0 %v563
        %679 = vmatpush1.msra.mxu0 %v562
        %680 = vmatprep.subr.mxu0 %v569
        %681 = vmatpush1.msra.mxu0 %v572
        %682 = vmatprep.subr.mxu0 %v591
        %683 = vmatpush1.msra.mxu0 %v590
        %684 = vmatprep.subr.mxu0 %v602
        %685 = vmatpush1.msra.mxu0 %v601
        %686 = vmatprep.subr.mxu0 %v452
        %687 = vmatpush1.msra.mxu0 %v451
        %688 = vmatprep.subr.mxu0 %v613
        %689 = vmatpush1.msra.mxu0 %v612
        %690 = vmatprep.subr.mxu0 %v624
        %691 = vmatpush1.msra.mxu0 %v623
        %692 = vmatprep.subr.mxu0 %v633
        %693 = vmatpush1.msra.mxu0 %v630
        %694 = vmatprep.subr.mxu0 %v644
        %695 = vmatpush1.msra.mxu0 %v643
        %696 = vmatprep.subr.mxu0 0.0
        %697 = vmatpush1.msra.mxu0 0.0
        %698 = vmatprep.subr.mxu0 0.0
        %699 = vmatpush1.msra.mxu0 0.0
        %700 = vmatprep.subr.mxu0 0.0
        %701 = vmatpush1.msra.mxu0 0.0
        %702 = vmatprep.subr.mxu0 0.0
        %703 = vmatpush1.msra.mxu0 0.0
        %704 = vmatprep.subr.mxu0 0.0
        %705 = vmatpush1.msra.mxu0 0.0
        %706 = vmatprep.subr.mxu0 0.0
        %707 = vmatpush1.msra.mxu0 0.0
        %708 = vmatprep.subr.mxu0 0.0
        %709 = vmatpush1.msra.mxu0 0.0
        %710 = vmatprep.subr.mxu0 0.0
        %711 = vmatpush1.msra.mxu0 0.0
        %712 = vmatprep.subr.mxu0 0.0
        %713 = vmatpush1.msra.mxu0 0.0
        %714 = vmatprep.subr.mxu0 0.0
        %715 = vmatpush1.msra.mxu0 0.0
        %716 = vmatprep.subr.mxu0 0.0
        %717 = vmatpush1.msra.mxu0 0.0
        %718 = vmatprep.subr.mxu0 0.0
        %719 = vmatpush1.msra.mxu0 0.0
        %720 = vmatprep.subr.mxu0 0.0
        %721 = vmatpush1.msra.mxu0 0.0
        %722 = vmatprep.subr.mxu0 0.0
        %723 = vmatpush1.msra.mxu0 0.0
        %724 = vmatprep.subr.mxu0 0.0
        %725 = vmatpush1.msra.mxu0 0.0
        %726 = vmatprep.subr.mxu0 0.0
        %727 = vmatpush1.msra.mxu0 0.0
        %728 = vmatprep.subr.mxu0 0.0
        %729 = vmatpush1.msra.mxu0 0.0
        %730 = vmatprep.subr.mxu0 0.0
        %731 = vmatpush1.msra.mxu0 0.0
        %732 = vmatprep.subr.mxu0 0.0
        %733 = vmatpush1.msra.mxu0 0.0
        %734 = vmatprep.subr.mxu0 0.0
        %735 = vmatpush1.msra.mxu0 0.0
        %736 = vmatprep.subr.mxu0 0.0
        %737 = vmatpush1.msra.mxu0 0.0
        %738 = vmatprep.subr.mxu0 0.0
        %739 = vmatpush1.msra.mxu0 0.0
        %740 = vmatprep.subr.mxu0 0.0
        %741 = vmatpush1.msra.mxu0 0.0
        %742 = vmatprep.mubr.f32.mxu0 0.0
        %743 = vmatmul.mubr.f32.gmra.mrb[0].mxu0 %v655
        %v744 = vpop.f32.mrb[0].mxu0
        %v745 = vadd.f32 0.0, %v744
        %v746 = vpop.f32.mrb[0].mxu0
        %v747 = vadd.f32 0.0, %v746
        %748 = vmatprep.mubr.f32.mxu0 0.0
        %749 = vmatmul.mubr.f32.gmra.mrb[0].mxu0 %v658
        %v750 = vpop.f32.mrb[0].mxu0
        %v751 = vadd.f32 0.0, %v750
        %v752 = vpop.f32.mrb[0].mxu0
        %v753 = vadd.f32 0.0, %v752
        %754 = vmatprep.mubr.f32.mxu0 0.0
        %755 = vmatmul.mubr.f32.gmra.mrb[0].mxu0 %v661
        %v756 = vpop.f32.mrb[0].mxu0
        %v757 = vadd.f32 0.0, %v756
        %v758 = vpop.f32.mrb[0].mxu0
        %v759 = vadd.f32 0.0, %v758
        %760 = vmatprep.mubr.f32.mxu0 0.0
        %761 = vmatmul.mubr.f32.gmra.mrb[0].mxu0 %v664
        %v762 = vpop.f32.mrb[0].mxu0
        %v763 = vadd.f32 0.0, %v762
        %v764 = vpop.f32.mrb[0].mxu0
        %v765 = vadd.f32 0.0, %v764
        %766 = vmatprep.mubr.f32.mxu0 0.0
        %767 = vmatmul.mubr.f32.gmra.mrb[0].mxu0 %v667
        %v768 = vpop.f32.mrb[0].mxu0
        %v769 = vadd.f32 0.0, %v768
        %v770 = vpop.f32.mrb[0].mxu0
        %v771 = vadd.f32 0.0, %v770
        %772 = vmatprep.mubr.f32.mxu0 0.0
        %773 = vmatmul.mubr.f32.gmra.mrb[0].mxu0 %v670
        %v774 = vpop.f32.mrb[0].mxu0
        %v775 = vadd.f32 0.0, %v774
        %v776 = vpop.f32.mrb[0].mxu0
        %v777 = vadd.f32 0.0, %v776
        %778 = vmatprep.mubr.f32.mxu0 0.0
        %779 = vmatmul.mubr.f32.gmra.mrb[0].mxu0 %v673
        %v780 = vpop.f32.mrb[0].mxu0
        %v781 = vadd.f32 0.0, %v780
        %v782 = vpop.f32.mrb[0].mxu0
        %v783 = vadd.f32 0.0, %v782
        %784 = vmatprep.mubr.f32.mxu0 0.0
        %785 = vmatmul.mubr.f32.gmra.mrb[0].mxu0 %v676
        %v786 = vpop.f32.mrb[0].mxu0
        %v787 = vadd.f32 0.0, %v786
        %v788 = vpop.f32.mrb[0].mxu0
        %v789 = vadd.f32 0.0, %v788
        %790 = vdwg.mxu0
        %v791 = vlaneseq
        %v792 = vshrl.u32 %v791, 7
        %v793 = vsub.s32 0, %v792
        %v794 = vrot.slane %v441, %v793
        %v795 = vlaneseq
        %v796 = vshrl.u32 %v795, 7
        %v797 = vsub.s32 0, %v796
        %v798 = vrot.slane %v442, %v797
        %v799 = vmul.f32 %v794, %v745
        %v800 = vmul.f32 %v798, %v747
        %801 = vxpose.xlu0.b32.start [1/16] %v535, 128
        %802 = vxpose.xlu0.b32.cont [2/16] 0.0, 128
        %803 = vxpose.xlu0.b32.cont [3/16] 0.0, 128
        %804 = vxpose.xlu0.b32.cont [4/16] 0.0, 128
        %805 = vxpose.xlu0.b32.cont [5/16] 0.0, 128
        %806 = vxpose.xlu0.b32.cont [6/16] 0.0, 128
        %807 = vxpose.xlu0.b32.cont [7/16] 0.0, 128
        %808 = vxpose.xlu0.b32.cont [8/16] 0.0, 128
        %809 = vxpose.xlu0.b32.cont [9/16] 0.0, 128
        %810 = vxpose.xlu0.b32.cont [10/16] 0.0, 128
        %811 = vxpose.xlu0.b32.cont [11/16] 0.0, 128
        %812 = vxpose.xlu0.b32.cont [12/16] 0.0, 128
        %813 = vxpose.xlu0.b32.cont [13/16] 0.0, 128
        %814 = vxpose.xlu0.b32.cont [14/16] 0.0, 128
        %815 = vxpose.xlu0.b32.cont [15/16] 0.0, 128
        %816 = vxpose.xlu0.b32.end [16/16] 0.0, 128
        %v817 = vpop.trf.xlu0
        %v818 = vpop.trf.xlu0
        %v819 = vpop.trf.xlu0
        %v820 = vpop.trf.xlu0
        %v821 = vpop.trf.xlu0
        %v822 = vpop.trf.xlu0
        %v823 = vpop.trf.xlu0
        %v824 = vpop.trf.xlu0
        %v825 = vpop.trf.xlu0
        %v826 = vpop.trf.xlu0
        %v827 = vpop.trf.xlu0
        %v828 = vpop.trf.xlu0
        %v829 = vpop.trf.xlu0
        %v830 = vpop.trf.xlu0
        %v831 = vpop.trf.xlu0
        %v832 = vpop.trf.xlu0
        %vm833 = vcmask 64512
        %v835 = vsel %vm833, %v817, 0
        %837 = vmatprep.subr.mxu0 %v442
        %838 = vmatpush1.msra.mxu0 %v441
        %839 = vmatprep.subr.mxu0 0.0
        %840 = vmatpush1.msra.mxu0 0.0
        %841 = vmatprep.subr.mxu0 0.0
        %842 = vmatpush1.msra.mxu0 0.0
        %843 = vmatprep.subr.mxu0 0.0
        %844 = vmatpush1.msra.mxu0 0.0
        %845 = vmatprep.subr.mxu0 0.0
        %846 = vmatpush1.msra.mxu0 0.0
        %847 = vmatprep.subr.mxu0 0.0
        %848 = vmatpush1.msra.mxu0 0.0
        %849 = vmatprep.subr.mxu0 0.0
        %850 = vmatpush1.msra.mxu0 0.0
        %851 = vmatprep.subr.mxu0 0.0
        %852 = vmatpush1.msra.mxu0 0.0
        %853 = vmatprep.subr.mxu0 0.0
        %854 = vmatpush1.msra.mxu0 0.0
        %855 = vmatprep.subr.mxu0 0.0
        %856 = vmatpush1.msra.mxu0 0.0
        %857 = vmatprep.subr.mxu0 0.0
        %858 = vmatpush1.msra.mxu0 0.0
        %859 = vmatprep.subr.mxu0 0.0
        %860 = vmatpush1.msra.mxu0 0.0
        %861 = vmatprep.subr.mxu0 0.0
        %862 = vmatpush1.msra.mxu0 0.0
        %863 = vmatprep.subr.mxu0 0.0
        %864 = vmatpush1.msra.mxu0 0.0
        %865 = vmatprep.subr.mxu0 0.0
        %866 = vmatpush1.msra.mxu0 0.0
        %867 = vmatprep.subr.mxu0 0.0
        %868 = vmatpush1.msra.mxu0 0.0
        %869 = vmatprep.subr.mxu0 0.0
        %870 = vmatpush1.msra.mxu0 0.0
        %871 = vmatprep.subr.mxu0 0.0
        %872 = vmatpush1.msra.mxu0 0.0
        %873 = vmatprep.subr.mxu0 0.0
        %874 = vmatpush1.msra.mxu0 0.0
        %875 = vmatprep.subr.mxu0 0.0
        %876 = vmatpush1.msra.mxu0 0.0
        %877 = vmatprep.subr.mxu0 0.0
        %878 = vmatpush1.msra.mxu0 0.0
        %879 = vmatprep.subr.mxu0 0.0
        %880 = vmatpush1.msra.mxu0 0.0
        %881 = vmatprep.subr.mxu0 0.0
        %882 = vmatpush1.msra.mxu0 0.0
        %883 = vmatprep.subr.mxu0 0.0
        %884 = vmatpush1.msra.mxu0 0.0
        %885 = vmatprep.subr.mxu0 0.0
        %886 = vmatpush1.msra.mxu0 0.0
        %887 = vmatprep.subr.mxu0 0.0
        %888 = vmatpush1.msra.mxu0 0.0
        %889 = vmatprep.subr.mxu0 0.0
        %890 = vmatpush1.msra.mxu0 0.0
        %891 = vmatprep.subr.mxu0 0.0
        %892 = vmatpush1.msra.mxu0 0.0
        %893 = vmatprep.subr.mxu0 0.0
        %894 = vmatpush1.msra.mxu0 0.0
        %895 = vmatprep.subr.mxu0 0.0
        %896 = vmatpush1.msra.mxu0 0.0
        %897 = vmatprep.subr.mxu0 0.0
        %898 = vmatpush1.msra.mxu0 0.0
        %899 = vmatprep.subr.mxu0 0.0
        %900 = vmatpush1.msra.mxu0 0.0
        %901 = vmatprep.mubr.f32.mxu0 0.0
        %902 = vmatmul.mubr.f32.gmra.mrb[0].mxu0 %v835
        %v903 = vpop.f32.mrb[0].mxu0
        %v904 = vadd.f32 %v799, %v903
        %v905 = vpop.f32.mrb[0].mxu0
        %v906 = vadd.f32 %v800, %v905
        %907 = vdwg.mxu0
        %v908 = vlaneseq
        %v909 = vshrl.u32 %v908, 7
        %v910 = vsub.s32 1, %v909
        %v911 = vrot.slane %v441, %v910
        %v912 = vlaneseq
        %v913 = vshrl.u32 %v912, 7
        %v914 = vsub.s32 1, %v913
        %v915 = vrot.slane %v442, %v914
        %v916 = vmul.f32 %v911, %v751
        %v917 = vmul.f32 %v915, %v753
        %v918 = vadd.f32 %v904, %v916
        %v919 = vadd.f32 %v906, %v917
        %v920 = vlaneseq
        %v921 = vshrl.u32 %v920, 7
        %v922 = vsub.s32 2, %v921
        %v923 = vrot.slane %v441, %v922
        %v924 = vlaneseq
        %v925 = vshrl.u32 %v924, 7
        %v926 = vsub.s32 2, %v925
        %v927 = vrot.slane %v442, %v926
        %v928 = vmul.f32 %v923, %v757
        %v929 = vmul.f32 %v927, %v759
        %v930 = vadd.f32 %v918, %v928
        %v931 = vadd.f32 %v919, %v929
        %v932 = vlaneseq
        %v933 = vshrl.u32 %v932, 7
        %v934 = vsub.s32 3, %v933
        %v935 = vrot.slane %v441, %v934
        %v936 = vlaneseq
        %v937 = vshrl.u32 %v936, 7
        %v938 = vsub.s32 3, %v937
        %v939 = vrot.slane %v442, %v938
        %v940 = vmul.f32 %v935, %v763
        %v941 = vmul.f32 %v939, %v765
        %v942 = vadd.f32 %v930, %v940
        %v943 = vadd.f32 %v931, %v941
        %v944 = vlaneseq
        %v945 = vshrl.u32 %v944, 7
        %v946 = vsub.s32 4, %v945
        %v947 = vrot.slane %v441, %v946
        %v948 = vlaneseq
        %v949 = vshrl.u32 %v948, 7
        %v950 = vsub.s32 4, %v949
        %v951 = vrot.slane %v442, %v950
        %v952 = vmul.f32 %v947, %v769
        %v953 = vmul.f32 %v951, %v771
        %v954 = vadd.f32 %v942, %v952
        %v955 = vadd.f32 %v943, %v953
        %v956 = vlaneseq
        %v957 = vshrl.u32 %v956, 7
        %v958 = vsub.s32 5, %v957
        %v959 = vrot.slane %v441, %v958
        %v960 = vlaneseq
        %v961 = vshrl.u32 %v960, 7
        %v962 = vsub.s32 5, %v961
        %v963 = vrot.slane %v442, %v962
        %v964 = vmul.f32 %v959, %v775
        %v965 = vmul.f32 %v963, %v777
        %v966 = vadd.f32 %v954, %v964
        %v967 = vadd.f32 %v955, %v965
        %v968 = vlaneseq
        %v969 = vshrl.u32 %v968, 7
        %v970 = vsub.s32 6, %v969
        %v971 = vrot.slane %v441, %v970
        %v972 = vlaneseq
        %v973 = vshrl.u32 %v972, 7
        %v974 = vsub.s32 6, %v973
        %v975 = vrot.slane %v442, %v974
        %v976 = vmul.f32 %v971, %v781
        %v977 = vmul.f32 %v975, %v783
        %v978 = vadd.f32 %v966, %v976
        %v979 = vadd.f32 %v967, %v977
        %v980 = vlaneseq
        %v981 = vshrl.u32 %v980, 7
        %v982 = vsub.s32 7, %v981
        %v983 = vrot.slane %v441, %v982
        %v984 = vlaneseq
        %v985 = vshrl.u32 %v984, 7
        %v986 = vsub.s32 7, %v985
        %v987 = vrot.slane %v442, %v986
        %v988 = vmul.f32 %v983, %v787
        %v989 = vmul.f32 %v987, %v789
        %v990 = vadd.f32 %v978, %v988
        %v991 = vadd.f32 %v979, %v989
        %992 = vst [vmem:[%s217] sm:$0xff] %v990
        %993 = vst [vmem:[%s217 + $0x8] sm:$0xff] %v991
        %v994 = vlaneseq
        %v995 = vshrl.u32 %v994, 7
        %v996 = vsub.s32 0, %v995
        %v997 = vrot.slane %v443, %v996
        %v998 = vlaneseq
        %v999 = vshrl.u32 %v998, 7
        %v1000 = vsub.s32 0, %v999
        %v1001 = vrot.slane %v444, %v1000
        %v1002 = vmul.f32 %v997, %v745
        %v1003 = vmul.f32 %v1001, %v747
        %1004 = vmatprep.subr.mxu0 %v444
        %1005 = vmatpush1.msra.mxu0 %v443
        %1006 = vmatprep.subr.mxu0 0.0
        %1007 = vmatpush1.msra.mxu0 0.0
        %1008 = vmatprep.subr.mxu0 0.0
        %1009 = vmatpush1.msra.mxu0 0.0
        %1010 = vmatprep.subr.mxu0 0.0
        %1011 = vmatpush1.msra.mxu0 0.0
        %1012 = vmatprep.subr.mxu0 0.0
        %1013 = vmatpush1.msra.mxu0 0.0
        %1014 = vmatprep.subr.mxu0 0.0
        %1015 = vmatpush1.msra.mxu0 0.0
        %1016 = vmatprep.subr.mxu0 0.0
        %1017 = vmatpush1.msra.mxu0 0.0
        %1018 = vmatprep.subr.mxu0 0.0
        %1019 = vmatpush1.msra.mxu0 0.0
        %1020 = vmatprep.subr.mxu0 0.0
        %1021 = vmatpush1.msra.mxu0 0.0
        %1022 = vmatprep.subr.mxu0 0.0
        %1023 = vmatpush1.msra.mxu0 0.0
        %1024 = vmatprep.subr.mxu0 0.0
        %1025 = vmatpush1.msra.mxu0 0.0
        %1026 = vmatprep.subr.mxu0 0.0
        %1027 = vmatpush1.msra.mxu0 0.0
        %1028 = vmatprep.subr.mxu0 0.0
        %1029 = vmatpush1.msra.mxu0 0.0
        %1030 = vmatprep.subr.mxu0 0.0
        %1031 = vmatpush1.msra.mxu0 0.0
        %1032 = vmatprep.subr.mxu0 0.0
        %1033 = vmatpush1.msra.mxu0 0.0
        %1034 = vmatprep.subr.mxu0 0.0
        %1035 = vmatpush1.msra.mxu0 0.0
        %1036 = vmatprep.subr.mxu0 0.0
        %1037 = vmatpush1.msra.mxu0 0.0
        %1038 = vmatprep.subr.mxu0 0.0
        %1039 = vmatpush1.msra.mxu0 0.0
        %1040 = vmatprep.subr.mxu0 0.0
        %1041 = vmatpush1.msra.mxu0 0.0
        %1042 = vmatprep.subr.mxu0 0.0
        %1043 = vmatpush1.msra.mxu0 0.0
        %1044 = vmatprep.subr.mxu0 0.0
        %1045 = vmatpush1.msra.mxu0 0.0
        %1046 = vmatprep.subr.mxu0 0.0
        %1047 = vmatpush1.msra.mxu0 0.0
        %1048 = vmatprep.subr.mxu0 0.0
        %1049 = vmatpush1.msra.mxu0 0.0
        %1050 = vmatprep.subr.mxu0 0.0
        %1051 = vmatpush1.msra.mxu0 0.0
        %1052 = vmatprep.subr.mxu0 0.0
        %1053 = vmatpush1.msra.mxu0 0.0
        %1054 = vmatprep.subr.mxu0 0.0
        %1055 = vmatpush1.msra.mxu0 0.0
        %1056 = vmatprep.subr.mxu0 0.0
        %1057 = vmatpush1.msra.mxu0 0.0
        %1058 = vmatprep.subr.mxu0 0.0
        %1059 = vmatpush1.msra.mxu0 0.0
        %1060 = vmatprep.subr.mxu0 0.0
        %1061 = vmatpush1.msra.mxu0 0.0
        %1062 = vmatprep.subr.mxu0 0.0
        %1063 = vmatpush1.msra.mxu0 0.0
        %1064 = vmatprep.subr.mxu0 0.0
        %1065 = vmatpush1.msra.mxu0 0.0
        %1066 = vmatprep.subr.mxu0 0.0
        %1067 = vmatpush1.msra.mxu0 0.0
        %1068 = vmatprep.mubr.f32.mxu0 0.0
        %1069 = vmatmul.mubr.f32.gmra.mrb[0].mxu0 %v835
        %v1070 = vpop.f32.mrb[0].mxu0
        %v1071 = vadd.f32 %v1002, %v1070
        %v1072 = vpop.f32.mrb[0].mxu0
        %v1073 = vadd.f32 %v1003, %v1072
        %1074 = vdwg.mxu0
        %v1075 = vlaneseq
        %v1076 = vshrl.u32 %v1075, 7
        %v1077 = vsub.s32 1, %v1076
        %v1078 = vrot.slane %v443, %v1077
        %v1079 = vlaneseq
        %v1080 = vshrl.u32 %v1079, 7
        %v1081 = vsub.s32 1, %v1080
        %v1082 = vrot.slane %v444, %v1081
        %v1083 = vmul.f32 %v1078, %v751
        %v1084 = vmul.f32 %v1082, %v753
        %v1085 = vadd.f32 %v1071, %v1083
        %v1086 = vadd.f32 %v1073, %v1084
        %v1087 = vlaneseq
        %v1088 = vshrl.u32 %v1087, 7
        %v1089 = vsub.s32 2, %v1088
        %v1090 = vrot.slane %v443, %v1089
        %v1091 = vlaneseq
        %v1092 = vshrl.u32 %v1091, 7
        %v1093 = vsub.s32 2, %v1092
        %v1094 = vrot.slane %v444, %v1093
        %v1095 = vmul.f32 %v1090, %v757
        %v1096 = vmul.f32 %v1094, %v759
        %v1097 = vadd.f32 %v1085, %v1095
        %v1098 = vadd.f32 %v1086, %v1096
        %v1099 = vlaneseq
        %v1100 = vshrl.u32 %v1099, 7
        %v1101 = vsub.s32 3, %v1100
        %v1102 = vrot.slane %v443, %v1101
        %v1103 = vlaneseq
        %v1104 = vshrl.u32 %v1103, 7
        %v1105 = vsub.s32 3, %v1104
        %v1106 = vrot.slane %v444, %v1105
        %v1107 = vmul.f32 %v1102, %v763
        %v1108 = vmul.f32 %v1106, %v765
        %v1109 = vadd.f32 %v1097, %v1107
        %v1110 = vadd.f32 %v1098, %v1108
        %v1111 = vlaneseq
        %v1112 = vshrl.u32 %v1111, 7
        %v1113 = vsub.s32 4, %v1112
        %v1114 = vrot.slane %v443, %v1113
        %v1115 = vlaneseq
        %v1116 = vshrl.u32 %v1115, 7
        %v1117 = vsub.s32 4, %v1116
        %v1118 = vrot.slane %v444, %v1117
        %v1119 = vmul.f32 %v1114, %v769
        %v1120 = vmul.f32 %v1118, %v771
        %v1121 = vadd.f32 %v1109, %v1119
        %v1122 = vadd.f32 %v1110, %v1120
        %v1123 = vlaneseq
        %v1124 = vshrl.u32 %v1123, 7
        %v1125 = vsub.s32 5, %v1124
        %v1126 = vrot.slane %v443, %v1125
        %v1127 = vlaneseq
        %v1128 = vshrl.u32 %v1127, 7
        %v1129 = vsub.s32 5, %v1128
        %v1130 = vrot.slane %v444, %v1129
        %v1131 = vmul.f32 %v1126, %v775
        %v1132 = vmul.f32 %v1130, %v777
        %v1133 = vadd.f32 %v1121, %v1131
        %v1134 = vadd.f32 %v1122, %v1132
        %v1135 = vlaneseq
        %v1136 = vshrl.u32 %v1135, 7
        %v1137 = vsub.s32 6, %v1136
        %v1138 = vrot.slane %v443, %v1137
        %v1139 = vlaneseq
        %v1140 = vshrl.u32 %v1139, 7
        %v1141 = vsub.s32 6, %v1140
        %v1142 = vrot.slane %v444, %v1141
        %v1143 = vmul.f32 %v1138, %v781
        %v1144 = vmul.f32 %v1142, %v783
        %v1145 = vadd.f32 %v1133, %v1143
        %v1146 = vadd.f32 %v1134, %v1144
        %v1147 = vlaneseq
        %v1148 = vshrl.u32 %v1147, 7
        %v1149 = vsub.s32 7, %v1148
        %v1150 = vrot.slane %v443, %v1149
        %v1151 = vlaneseq
        %v1152 = vshrl.u32 %v1151, 7
        %v1153 = vsub.s32 7, %v1152
        %v1154 = vrot.slane %v444, %v1153
        %v1155 = vmul.f32 %v1150, %v787
        %v1156 = vmul.f32 %v1154, %v789
        %v1157 = vadd.f32 %v1145, %v1155
        %v1158 = vadd.f32 %v1146, %v1156
        %1159 = vst [vmem:[%s217 + $0x10] sm:$0xff] %v1157
        %1160 = vst [vmem:[%s217 + $0x18] sm:$0xff] %v1158
        %v1161 = vlaneseq
        %v1162 = vshrl.u32 %v1161, 7
        %v1163 = vsub.s32 0, %v1162
        %v1164 = vrot.slane %v445, %v1163
        %v1165 = vlaneseq
        %v1166 = vshrl.u32 %v1165, 7
        %v1167 = vsub.s32 0, %v1166
        %v1168 = vrot.slane %v446, %v1167
        %v1169 = vmul.f32 %v1164, %v745
        %v1170 = vmul.f32 %v1168, %v747
        %1171 = vmatprep.subr.mxu0 %v446
        %1172 = vmatpush1.msra.mxu0 %v445
        %1173 = vmatprep.subr.mxu0 0.0
        %1174 = vmatpush1.msra.mxu0 0.0
        %1175 = vmatprep.subr.mxu0 0.0
        %1176 = vmatpush1.msra.mxu0 0.0
        %1177 = vmatprep.subr.mxu0 0.0
        %1178 = vmatpush1.msra.mxu0 0.0
        %1179 = vmatprep.subr.mxu0 0.0
        %1180 = vmatpush1.msra.mxu0 0.0
        %1181 = vmatprep.subr.mxu0 0.0
        %1182 = vmatpush1.msra.mxu0 0.0
        %1183 = vmatprep.subr.mxu0 0.0
        %1184 = vmatpush1.msra.mxu0 0.0
        %1185 = vmatprep.subr.mxu0 0.0
        %1186 = vmatpush1.msra.mxu0 0.0
        %1187 = vmatprep.subr.mxu0 0.0
        %1188 = vmatpush1.msra.mxu0 0.0
        %1189 = vmatprep.subr.mxu0 0.0
        %1190 = vmatpush1.msra.mxu0 0.0
        %1191 = vmatprep.subr.mxu0 0.0
        %1192 = vmatpush1.msra.mxu0 0.0
        %1193 = vmatprep.subr.mxu0 0.0
        %1194 = vmatpush1.msra.mxu0 0.0
        %1195 = vmatprep.subr.mxu0 0.0
        %1196 = vmatpush1.msra.mxu0 0.0
        %1197 = vmatprep.subr.mxu0 0.0
        %1198 = vmatpush1.msra.mxu0 0.0
        %1199 = vmatprep.subr.mxu0 0.0
        %1200 = vmatpush1.msra.mxu0 0.0
        %1201 = vmatprep.subr.mxu0 0.0
        %1202 = vmatpush1.msra.mxu0 0.0
        %1203 = vmatprep.subr.mxu0 0.0
        %1204 = vmatpush1.msra.mxu0 0.0
        %1205 = vmatprep.subr.mxu0 0.0
        %1206 = vmatpush1.msra.mxu0 0.0
        %1207 = vmatprep.subr.mxu0 0.0
        %1208 = vmatpush1.msra.mxu0 0.0
        %1209 = vmatprep.subr.mxu0 0.0
        %1210 = vmatpush1.msra.mxu0 0.0
        %1211 = vmatprep.subr.mxu0 0.0
        %1212 = vmatpush1.msra.mxu0 0.0
        %1213 = vmatprep.subr.mxu0 0.0
        %1214 = vmatpush1.msra.mxu0 0.0
        %1215 = vmatprep.subr.mxu0 0.0
        %1216 = vmatpush1.msra.mxu0 0.0
        %1217 = vmatprep.subr.mxu0 0.0
        %1218 = vmatpush1.msra.mxu0 0.0
        %1219 = vmatprep.subr.mxu0 0.0
        %1220 = vmatpush1.msra.mxu0 0.0
        %1221 = vmatprep.subr.mxu0 0.0
        %1222 = vmatpush1.msra.mxu0 0.0
        %1223 = vmatprep.subr.mxu0 0.0
        %1224 = vmatpush1.msra.mxu0 0.0
        %1225 = vmatprep.subr.mxu0 0.0
        %1226 = vmatpush1.msra.mxu0 0.0
        %1227 = vmatprep.subr.mxu0 0.0
        %1228 = vmatpush1.msra.mxu0 0.0
        %1229 = vmatprep.subr.mxu0 0.0
        %1230 = vmatpush1.msra.mxu0 0.0
        %1231 = vmatprep.subr.mxu0 0.0
        %1232 = vmatpush1.msra.mxu0 0.0
        %1233 = vmatprep.subr.mxu0 0.0
        %1234 = vmatpush1.msra.mxu0 0.0
        %1235 = vmatprep.mubr.f32.mxu0 0.0
        %1236 = vmatmul.mubr.f32.gmra.mrb[0].mxu0 %v835
        %v1237 = vpop.f32.mrb[0].mxu0
        %v1238 = vadd.f32 %v1169, %v1237
        %v1239 = vpop.f32.mrb[0].mxu0
        %v1240 = vadd.f32 %v1170, %v1239
        %1241 = vdwg.mxu0
        %v1242 = vlaneseq
        %v1243 = vshrl.u32 %v1242, 7
        %v1244 = vsub.s32 1, %v1243
        %v1245 = vrot.slane %v445, %v1244
        %v1246 = vlaneseq
        %v1247 = vshrl.u32 %v1246, 7
        %v1248 = vsub.s32 1, %v1247
        %v1249 = vrot.slane %v446, %v1248
        %v1250 = vmul.f32 %v1245, %v751
        %v1251 = vmul.f32 %v1249, %v753
        %v1252 = vadd.f32 %v1238, %v1250
        %v1253 = vadd.f32 %v1240, %v1251
        %v1254 = vlaneseq
        %v1255 = vshrl.u32 %v1254, 7
        %v1256 = vsub.s32 2, %v1255
        %v1257 = vrot.slane %v445, %v1256
        %v1258 = vlaneseq
        %v1259 = vshrl.u32 %v1258, 7
        %v1260 = vsub.s32 2, %v1259
        %v1261 = vrot.slane %v446, %v1260
        %v1262 = vmul.f32 %v1257, %v757
        %v1263 = vmul.f32 %v1261, %v759
        %v1264 = vadd.f32 %v1252, %v1262
        %v1265 = vadd.f32 %v1253, %v1263
        %v1266 = vlaneseq
        %v1267 = vshrl.u32 %v1266, 7
        %v1268 = vsub.s32 3, %v1267
        %v1269 = vrot.slane %v445, %v1268
        %v1270 = vlaneseq
        %v1271 = vshrl.u32 %v1270, 7
        %v1272 = vsub.s32 3, %v1271
        %v1273 = vrot.slane %v446, %v1272
        %v1274 = vmul.f32 %v1269, %v763
        %v1275 = vmul.f32 %v1273, %v765
        %v1276 = vadd.f32 %v1264, %v1274
        %v1277 = vadd.f32 %v1265, %v1275
        %v1278 = vlaneseq
        %v1279 = vshrl.u32 %v1278, 7
        %v1280 = vsub.s32 4, %v1279
        %v1281 = vrot.slane %v445, %v1280
        %v1282 = vlaneseq
        %v1283 = vshrl.u32 %v1282, 7
        %v1284 = vsub.s32 4, %v1283
        %v1285 = vrot.slane %v446, %v1284
        %v1286 = vmul.f32 %v1281, %v769
        %v1287 = vmul.f32 %v1285, %v771
        %v1288 = vadd.f32 %v1276, %v1286
        %v1289 = vadd.f32 %v1277, %v1287
        %v1290 = vlaneseq
        %v1291 = vshrl.u32 %v1290, 7
        %v1292 = vsub.s32 5, %v1291
        %v1293 = vrot.slane %v445, %v1292
        %v1294 = vlaneseq
        %v1295 = vshrl.u32 %v1294, 7
        %v1296 = vsub.s32 5, %v1295
        %v1297 = vrot.slane %v446, %v1296
        %v1298 = vmul.f32 %v1293, %v775
        %v1299 = vmul.f32 %v1297, %v777
        %v1300 = vadd.f32 %v1288, %v1298
        %v1301 = vadd.f32 %v1289, %v1299
        %v1302 = vlaneseq
        %v1303 = vshrl.u32 %v1302, 7
        %v1304 = vsub.s32 6, %v1303
        %v1305 = vrot.slane %v445, %v1304
        %v1306 = vlaneseq
        %v1307 = vshrl.u32 %v1306, 7
        %v1308 = vsub.s32 6, %v1307
        %v1309 = vrot.slane %v446, %v1308
        %v1310 = vmul.f32 %v1305, %v781
        %v1311 = vmul.f32 %v1309, %v783
        %v1312 = vadd.f32 %v1300, %v1310
        %v1313 = vadd.f32 %v1301, %v1311
        %v1314 = vlaneseq
        %v1315 = vshrl.u32 %v1314, 7
        %v1316 = vsub.s32 7, %v1315
        %v1317 = vrot.slane %v445, %v1316
        %v1318 = vlaneseq
        %v1319 = vshrl.u32 %v1318, 7
        %v1320 = vsub.s32 7, %v1319
        %v1321 = vrot.slane %v446, %v1320
        %v1322 = vmul.f32 %v1317, %v787
        %v1323 = vmul.f32 %v1321, %v789
        %v1324 = vadd.f32 %v1312, %v1322
        %v1325 = vadd.f32 %v1313, %v1323
        %1326 = vst [vmem:[%s217 + $0x20] sm:$0xff] %v1324
        %1327 = vst [vmem:[%s217 + $0x28] sm:$0xff] %v1325
        %v1328 = vlaneseq
        %v1329 = vshrl.u32 %v1328, 7
        %v1330 = vsub.s32 0, %v1329
        %v1331 = vrot.slane %v447, %v1330
        %v1332 = vlaneseq
        %v1333 = vshrl.u32 %v1332, 7
        %v1334 = vsub.s32 0, %v1333
        %v1335 = vrot.slane %v448, %v1334
        %v1336 = vmul.f32 %v1331, %v745
        %v1337 = vmul.f32 %v1335, %v747
        %1338 = vmatprep.subr.mxu0 %v448
        %1339 = vmatpush1.msra.mxu0 %v447
        %1340 = vmatprep.subr.mxu0 0.0
        %1341 = vmatpush1.msra.mxu0 0.0
        %1342 = vmatprep.subr.mxu0 0.0
        %1343 = vmatpush1.msra.mxu0 0.0
        %1344 = vmatprep.subr.mxu0 0.0
        %1345 = vmatpush1.msra.mxu0 0.0
        %1346 = vmatprep.subr.mxu0 0.0
        %1347 = vmatpush1.msra.mxu0 0.0
        %1348 = vmatprep.subr.mxu0 0.0
        %1349 = vmatpush1.msra.mxu0 0.0
        %1350 = vmatprep.subr.mxu0 0.0
        %1351 = vmatpush1.msra.mxu0 0.0
        %1352 = vmatprep.subr.mxu0 0.0
        %1353 = vmatpush1.msra.mxu0 0.0
        %1354 = vmatprep.subr.mxu0 0.0
        %1355 = vmatpush1.msra.mxu0 0.0
        %1356 = vmatprep.subr.mxu0 0.0
        %1357 = vmatpush1.msra.mxu0 0.0
        %1358 = vmatprep.subr.mxu0 0.0
        %1359 = vmatpush1.msra.mxu0 0.0
        %1360 = vmatprep.subr.mxu0 0.0
        %1361 = vmatpush1.msra.mxu0 0.0
        %1362 = vmatprep.subr.mxu0 0.0
        %1363 = vmatpush1.msra.mxu0 0.0
        %1364 = vmatprep.subr.mxu0 0.0
        %1365 = vmatpush1.msra.mxu0 0.0
        %1366 = vmatprep.subr.mxu0 0.0
        %1367 = vmatpush1.msra.mxu0 0.0
        %1368 = vmatprep.subr.mxu0 0.0
        %1369 = vmatpush1.msra.mxu0 0.0
        %1370 = vmatprep.subr.mxu0 0.0
        %1371 = vmatpush1.msra.mxu0 0.0
        %1372 = vmatprep.subr.mxu0 0.0
        %1373 = vmatpush1.msra.mxu0 0.0
        %1374 = vmatprep.subr.mxu0 0.0
        %1375 = vmatpush1.msra.mxu0 0.0
        %1376 = vmatprep.subr.mxu0 0.0
        %1377 = vmatpush1.msra.mxu0 0.0
        %1378 = vmatprep.subr.mxu0 0.0
        %1379 = vmatpush1.msra.mxu0 0.0
        %1380 = vmatprep.subr.mxu0 0.0
        %1381 = vmatpush1.msra.mxu0 0.0
        %1382 = vmatprep.subr.mxu0 0.0
        %1383 = vmatpush1.msra.mxu0 0.0
        %1384 = vmatprep.subr.mxu0 0.0
        %1385 = vmatpush1.msra.mxu0 0.0
        %1386 = vmatprep.subr.mxu0 0.0
        %1387 = vmatpush1.msra.mxu0 0.0
        %1388 = vmatprep.subr.mxu0 0.0
        %1389 = vmatpush1.msra.mxu0 0.0
        %1390 = vmatprep.subr.mxu0 0.0
        %1391 = vmatpush1.msra.mxu0 0.0
        %1392 = vmatprep.subr.mxu0 0.0
        %1393 = vmatpush1.msra.mxu0 0.0
        %1394 = vmatprep.subr.mxu0 0.0
        %1395 = vmatpush1.msra.mxu0 0.0
        %1396 = vmatprep.subr.mxu0 0.0
        %1397 = vmatpush1.msra.mxu0 0.0
        %1398 = vmatprep.subr.mxu0 0.0
        %1399 = vmatpush1.msra.mxu0 0.0
        %1400 = vmatprep.subr.mxu0 0.0
        %1401 = vmatpush1.msra.mxu0 0.0
        %1402 = vmatprep.mubr.f32.mxu0 0.0
        %1403 = vmatmul.mubr.f32.gmra.mrb[0].mxu0 %v835
        %v1404 = vpop.f32.mrb[0].mxu0
        %v1405 = vadd.f32 %v1336, %v1404
        %v1406 = vpop.f32.mrb[0].mxu0
        %v1407 = vadd.f32 %v1337, %v1406
        %1408 = vdwg.mxu0
        %v1409 = vlaneseq
        %v1410 = vshrl.u32 %v1409, 7
        %v1411 = vsub.s32 1, %v1410
        %v1412 = vrot.slane %v447, %v1411
        %v1413 = vlaneseq
        %v1414 = vshrl.u32 %v1413, 7
        %v1415 = vsub.s32 1, %v1414
        %v1416 = vrot.slane %v448, %v1415
        %v1417 = vmul.f32 %v1412, %v751
        %v1418 = vmul.f32 %v1416, %v753
        %v1419 = vadd.f32 %v1405, %v1417
        %v1420 = vadd.f32 %v1407, %v1418
        %v1421 = vlaneseq
        %v1422 = vshrl.u32 %v1421, 7
        %v1423 = vsub.s32 2, %v1422
        %v1424 = vrot.slane %v447, %v1423
        %v1425 = vlaneseq
        %v1426 = vshrl.u32 %v1425, 7
        %v1427 = vsub.s32 2, %v1426
        %v1428 = vrot.slane %v448, %v1427
        %v1429 = vmul.f32 %v1424, %v757
        %v1430 = vmul.f32 %v1428, %v759
        %v1431 = vadd.f32 %v1419, %v1429
        %v1432 = vadd.f32 %v1420, %v1430
        %v1433 = vlaneseq
        %v1434 = vshrl.u32 %v1433, 7
        %v1435 = vsub.s32 3, %v1434
        %v1436 = vrot.slane %v447, %v1435
        %v1437 = vlaneseq
        %v1438 = vshrl.u32 %v1437, 7
        %v1439 = vsub.s32 3, %v1438
        %v1440 = vrot.slane %v448, %v1439
        %v1441 = vmul.f32 %v1436, %v763
        %v1442 = vmul.f32 %v1440, %v765
        %v1443 = vadd.f32 %v1431, %v1441
        %v1444 = vadd.f32 %v1432, %v1442
        %v1445 = vlaneseq
        %v1446 = vshrl.u32 %v1445, 7
        %v1447 = vsub.s32 4, %v1446
        %v1448 = vrot.slane %v447, %v1447
        %v1449 = vlaneseq
        %v1450 = vshrl.u32 %v1449, 7
        %v1451 = vsub.s32 4, %v1450
        %v1452 = vrot.slane %v448, %v1451
        %v1453 = vmul.f32 %v1448, %v769
        %v1454 = vmul.f32 %v1452, %v771
        %v1455 = vadd.f32 %v1443, %v1453
        %v1456 = vadd.f32 %v1444, %v1454
        %v1457 = vlaneseq
        %v1458 = vshrl.u32 %v1457, 7
        %v1459 = vsub.s32 5, %v1458
        %v1460 = vrot.slane %v447, %v1459
        %v1461 = vlaneseq
        %v1462 = vshrl.u32 %v1461, 7
        %v1463 = vsub.s32 5, %v1462
        %v1464 = vrot.slane %v448, %v1463
        %v1465 = vmul.f32 %v1460, %v775
        %v1466 = vmul.f32 %v1464, %v777
        %v1467 = vadd.f32 %v1455, %v1465
        %v1468 = vadd.f32 %v1456, %v1466
        %v1469 = vlaneseq
        %v1470 = vshrl.u32 %v1469, 7
        %v1471 = vsub.s32 6, %v1470
        %v1472 = vrot.slane %v447, %v1471
        %v1473 = vlaneseq
        %v1474 = vshrl.u32 %v1473, 7
        %v1475 = vsub.s32 6, %v1474
        %v1476 = vrot.slane %v448, %v1475
        %v1477 = vmul.f32 %v1472, %v781
        %v1478 = vmul.f32 %v1476, %v783
        %v1479 = vadd.f32 %v1467, %v1477
        %v1480 = vadd.f32 %v1468, %v1478
        %v1481 = vlaneseq
        %v1482 = vshrl.u32 %v1481, 7
        %v1483 = vsub.s32 7, %v1482
        %v1484 = vrot.slane %v447, %v1483
        %v1485 = vlaneseq
        %v1486 = vshrl.u32 %v1485, 7
        %v1487 = vsub.s32 7, %v1486
        %v1488 = vrot.slane %v448, %v1487
        %v1489 = vmul.f32 %v1484, %v787
        %v1490 = vmul.f32 %v1488, %v789
        %v1491 = vadd.f32 %v1479, %v1489
        %v1492 = vadd.f32 %v1480, %v1490
        %1493 = vst [vmem:[%s217 + $0x30] sm:$0xff] %v1491
        %1494 = vst [vmem:[%s217 + $0x38] sm:$0xff] %v1492
        %s1495 = sand.u32 %s137, 1
        %s1496 = scalar_lea.sflag [#allocation3], %s1495
        %s1497 = sand.u32 %s137, 1
        %s1498 = smul.addr %s1497, 64
        %s1499 = scalar_lea.vmem [#allocation2], %s1498
        // Predicated region
        $region41: #{tpu_custom_call.1} parent=39 // pred_check
          %p1500 = pneg %p147
        $region42: #{tpu_custom_call.1} parent=39 // pred_check_branch
          %1502 = sbr.rel (%p1500) target = $region44
        $region43: #{tpu_custom_call.1} parent=39 // pred_region
          %s1504 = ssub.s32 1024, 1024
          %1505 = vsyncadd %s1496, %s1504
          %s1506 = smul.addr %s19, 8
          %s1507 = smul.addr %s1506, 128
          %s1508 = scalar_lea.hbm %s5, %s1507
          %s1509 = sshll.u32 %s1499, 4
          %s1510 = int_to_ptr.vmem [resolvable:$true] %s1509
          %1515 = dma.vmem_to_hbm [thread:$0]  %s1510, 1024, %s1508, %s1496, 256, 256, 16
        $region44: #{tpu_custom_call.1} parent=39 // pred_fallthru
          _
      $region40: #{tpu_custom_call.1} parent=5 // pred_fallthru
        _
      %p1516 = scmp.le.s32.totalorder 2, %s14
      // Predicated region
      $region45: #{tpu_custom_call.1} parent=5 // pred_check
        %p1517 = pneg %p1516
      $region46: #{tpu_custom_call.1} parent=5 // pred_check_branch
        %1519 = sbr.rel (%p1517) target = $region48
      $region47: #{tpu_custom_call.1} parent=5 // pred_region
        %s1520 = ssub.s32 %s14, 2
        // Predicated region
        $region49: #{tpu_custom_call.1} parent=47 // pred_check
          %p1521 = pneg %p153
        $region50: #{tpu_custom_call.1} parent=47 // pred_check_branch
          %1523 = sbr.rel (%p1521) target = $region52
        $region51: #{tpu_custom_call.1} parent=47 // pred_region
          %s1524 = sand.u32 %s138, 1
          %s1525 = scalar_lea.sflag [#allocation3], %s1524
          %s1526 = sand.u32 %s138, 1
          %s1527 = smul.addr %s1526, 64
          %s1528 = scalar_lea.vmem [#allocation2], %s1527
          %1529 = dma.done %s1525, 1024
        $region52: #{tpu_custom_call.1} parent=47 // pred_fallthru
          _
      $region48: #{tpu_custom_call.1} parent=5 // pred_fallthru
        _
    $region6: #{tpu_custom_call.1} parent=1 // loop_footer
      %s18 = sadd.s32 1, %s14
    $region7: #{tpu_custom_call.1} parent=1 // loop_footer_branch
      %13 = sbr.rel target = $region3
    $region8: #{tpu_custom_call.1} parent=1 // loop_exit
      _
    %1530 = vsyncpa [#allocation3], 1
    %s1531 = scalar_lea.sflag [#allocation3], 1
    %1532 = vsyncpa %s1531, 1

</llo_original>
